<compile_context>
chip_gen: v7x
topology: tpu7x:2x2x1
jax: 0.10.0
libtpu: 0.0.40
codegen_flags: <defaults>
</compile_context>

<pallas_src>
import math

import jax
import jax.numpy as jnp
from jax import lax
from jax.experimental import pallas as pl
from jax.experimental.pallas import tpu as pltpu

NUM_HEADS = 8        # hard-coded in the PyTorch module
EPS_LN = 1e-5        # torch.nn.LayerNorm default
NEG_INF = -1e30      # additive mask value for padded keys


# ----------------------------------------------------------------------------
# In-kernel helper
# ----------------------------------------------------------------------------
def _layernorm(y, gamma, beta, eps=EPS_LN):
    mu = jnp.mean(y, axis=-1, keepdims=True)
    var = jnp.mean((y - mu) ** 2, axis=-1, keepdims=True)
    return (y - mu) * lax.rsqrt(var + eps) * gamma + beta


# ----------------------------------------------------------------------------
# Fused kernel: one batch element per grid step
# ----------------------------------------------------------------------------
def cross_modal_attention_kernel(
    q_ref, k_ref, v_ref, kpm_ref,
    wq_ref, bq_ref, wk_ref, bk_ref, wv_ref, bv_ref,
    wo_ref, bo_ref, g_ref, beta_ref,
    o_ref,
):
    q_in = q_ref[0]                       # (Lq, H) f32
    k_in = k_ref[0]                       # (Lk, H) f32
    v_in = v_ref[0]                       # (Lk, H) f32
    mask_bias = kpm_ref[0]                # (1, Lk) f32 additive mask (0 / -1e30)

    H = q_in.shape[-1]
    hd = H // NUM_HEADS
    scale = 1.0 / math.sqrt(hd)

    # ---- Q/K/V projections: bf16 operands, f32 accumulation on the MXU ----
    qp = jnp.dot(q_in.astype(jnp.bfloat16), wq_ref[...],
                 preferred_element_type=jnp.float32) + bq_ref[...]
    kp = jnp.dot(k_in.astype(jnp.bfloat16), wk_ref[...],
                 preferred_element_type=jnp.float32) + bk_ref[...]
    vp = jnp.dot(v_in.astype(jnp.bfloat16), wv_ref[...],
                 preferred_element_type=jnp.float32) + bv_ref[...]

    # ---- per-head scaled dot-product attention (f32) ----------------------
    ctx_heads = []
    for h in range(NUM_HEADS):            # unrolled; slices are static
        sl = slice(h * hd, (h + 1) * hd)
        qh = qp[:, sl]                    # (Lq, hd)
        kh = kp[:, sl]                    # (Lk, hd)
        vh = vp[:, sl]                    # (Lk, hd)
        s = lax.dot_general(qh, kh, (((1,), (1,)), ((), ())),
                            preferred_element_type=jnp.float32) * scale
        s = s + mask_bias                 # (Lq, Lk)
        s = s - jnp.max(s, axis=-1, keepdims=True)
        e = jnp.exp(s)
        p = e / jnp.sum(e, axis=-1, keepdims=True)
        ctx_heads.append(jnp.dot(p, vh, preferred_element_type=jnp.float32))
    ctx = jnp.concatenate(ctx_heads, axis=-1)          # (Lq, H)

    # ---- output projection + (identity) dropout + residual + LayerNorm ----
    attn = jnp.dot(ctx.astype(jnp.bfloat16), wo_ref[...],
                   preferred_element_type=jnp.float32) + bo_ref[...]
    y = q_in + attn                       # dropout is identity in eval mode
    o_ref[...] = _layernorm(y, g_ref[...], beta_ref[...])[None, :, :]


# ----------------------------------------------------------------------------
# Wrapper: single fused pallas_call, batch-parallel grid
# ----------------------------------------------------------------------------
def cross_modal_attention(query, key, value, params, key_padding_mask=None):
    B, Lq, H = query.shape
    Lk = key.shape[1]
    assert H % NUM_HEADS == 0

    # torch nn.MultiheadAttention stores in_proj_weight as (3H, H); linear is
    # x @ W.T + b, so pass transposed (in, out) weights to the kernel (bf16).
    w_in = params["in_proj_weight"]
    b_in = params["in_proj_bias"]
    wq = w_in[:H].T.astype(jnp.bfloat16)
    wk = w_in[H:2 * H].T.astype(jnp.bfloat16)
    wv = w_in[2 * H:].T.astype(jnp.bfloat16)
    bq = b_in[:H].reshape(1, H)
    bk = b_in[H:2 * H].reshape(1, H)
    bv = b_in[2 * H:].reshape(1, H)
    wo = params["out_proj_weight"].T.astype(jnp.bfloat16)
    bo = params["out_proj_bias"].reshape(1, H)
    g = params["ln_weight"].reshape(1, H)
    beta = params["ln_bias"].reshape(1, H)

    if key_padding_mask is None:
        mask_bias = jnp.zeros((B, 1, Lk), jnp.float32)
    else:  # torch semantics: True => key is ignored
        mask_bias = jnp.where(key_padding_mask, NEG_INF, 0.0)
        mask_bias = mask_bias.astype(jnp.float32).reshape(B, 1, Lk)

    def batched(shape):   # per-batch block, leading dim indexed by the grid
        n = len(shape) - 1
        return pl.BlockSpec((1,) + shape[1:], lambda b, _n=n: (b,) + (0,) * _n)

    def shared(shape):    # same block (weights / biases) for every grid step
        n = len(shape)
        return pl.BlockSpec(shape, lambda b, _n=n: (0,) * _n)

    return pl.pallas_call(
        cross_modal_attention_kernel,
        grid=(B,),
        in_specs=[
            batched(query.shape), batched(key.shape), batched(value.shape),
            batched(mask_bias.shape),
            shared(wq.shape), shared(bq.shape),
            shared(wk.shape), shared(bk.shape),
            shared(wv.shape), shared(bv.shape),
            shared(wo.shape), shared(bo.shape),
            shared(g.shape), shared(beta.shape),
        ],
        out_specs=batched((B, Lq, H)),
        out_shape=jax.ShapeDtypeStruct((B, Lq, H), jnp.float32),
        compiler_params=pltpu.CompilerParams(
            dimension_semantics=("parallel",)),
    )(query, key, value, mask_bias,
      wq, bq, wk, bk, wv, bv, wo, bo, g, beta)


# ----------------------------------------------------------------------------
# Pure-JAX f32 reference (matches torch.nn.MultiheadAttention semantics)
# ----------------------------------------------------------------------------
def reference_forward(query, key, value, params, key_padding_mask=None):
    B, Lq, H = query.shape
    Lk = key.shape[1]
    hd = H // NUM_HEADS
    w, b = params["in_proj_weight"], params["in_proj_bias"]
    q = query @ w[:H].T + b[:H]
    k = key @ w[H:2 * H].T + b[H:2 * H]
    v = value @ w[2 * H:].T + b[2 * H:]
    qh = q.reshape(B, Lq, NUM_HEADS, hd).transpose(0, 2, 1, 3)
    kh = k.reshape(B, Lk, NUM_HEADS, hd).transpose(0, 2, 1, 3)
    vh = v.reshape(B, Lk, NUM_HEADS, hd).transpose(0, 2, 1, 3)
    s = jnp.einsum("bnqd,bnkd->bnqk", qh, kh) / math.sqrt(hd)
    if key_padding_mask is not None:
        s = s + jnp.where(key_padding_mask, NEG_INF, 0.0)[:, None, None, :]
    p = jax.nn.softmax(s, axis=-1)
    ctx = jnp.einsum("bnqk,bnkd->bnqd", p, vh)
    ctx = ctx.transpose(0, 2, 1, 3).reshape(B, Lq, H)
    attn = ctx @ params["out_proj_weight"].T + params["out_proj_bias"]
    y = query + attn
    mu = y.mean(-1, keepdims=True)
    var = ((y - mu) ** 2).mean(-1, keepdims=True)
    return (y - mu) / jnp.sqrt(var + EPS_LN) * params["ln_weight"] + params["ln_bias"]


# ----------------------------------------------------------------------------
# Deterministic synthetic parameters
# ----------------------------------------------------------------------------
def make_params(key, H):
    ks = jax.random.split(key, 6)
    f32 = jnp.float32
    sc = 1.0 / math.sqrt(H)
    return {
        "in_proj_weight": jax.random.normal(ks[0], (3 * H, H), f32) * sc,
        "in_proj_bias": jax.random.normal(ks[1], (3 * H,), f32) * 0.02,
        "out_proj_weight": jax.random.normal(ks[2], (H, H), f32) * sc,
        "out_proj_bias": jax.random.normal(ks[3], (H,), f32) * 0.02,
        "ln_weight": 1.0 + jax.random.normal(ks[4], (H,), f32) * 0.02,
        "ln_bias": jax.random.normal(ks[5], (H,), f32) * 0.02,
    }


if __name__ == "__main__":
    # num_heads=8 -> head_dim=16; hidden=128 keeps all stores lane-dense.
    B, Lq, Lk, H = 2, 8, 16, 128

    root = jax.random.PRNGKey(0)
    kq, kk, kv, kp = jax.random.split(root, 4)
    query = jax.random.normal(kq, (B, Lq, H), jnp.float32)
    key_seq = jax.random.normal(kk, (B, Lk, H), jnp.float32)
    value = jax.random.normal(kv, (B, Lk, H), jnp.float32)
    params = make_params(kp, H)
    # pad the last 4 keys of batch element 1 (torch: True == ignore)
    key_padding_mask = jnp.zeros((B, Lk), jnp.bool_).at[1, Lk - 4:].set(True)

    fwd = jax.jit(cross_modal_attention)
    out = fwd(query, key_seq, value, params, key_padding_mask)
    jax.block_until_ready(out)
    assert out.shape == (B, Lq, H)

    ref = reference_forward(query, key_seq, value, params, key_padding_mask)
    err = float(jnp.max(jnp.abs(out - ref)))
    # bf16 projection matmuls -> loosened tolerance vs the pure-f32 reference
    assert err < 1e-1, f"max abs error vs reference: {err}"

    print("KERNEL_OK")
</pallas_src>

<mosaic_0001>
module attributes {stable_mosaic.version = 11 : i64} {
  func.func @cross_modal_attention_kernel(%arg0: i32, %arg1: memref<1x8x128xf32, #tpu.memory_space<vmem>>, %arg2: memref<1x16x128xf32, #tpu.memory_space<vmem>>, %arg3: memref<1x16x128xf32, #tpu.memory_space<vmem>>, %arg4: memref<1x1x16xf32, #tpu.memory_space<vmem>>, %arg5: memref<128x128xbf16, #tpu.memory_space<vmem>>, %arg6: memref<1x128xf32, #tpu.memory_space<vmem>>, %arg7: memref<128x128xbf16, #tpu.memory_space<vmem>>, %arg8: memref<1x128xf32, #tpu.memory_space<vmem>>, %arg9: memref<128x128xbf16, #tpu.memory_space<vmem>>, %arg10: memref<1x128xf32, #tpu.memory_space<vmem>>, %arg11: memref<128x128xbf16, #tpu.memory_space<vmem>>, %arg12: memref<1x128xf32, #tpu.memory_space<vmem>>, %arg13: memref<1x128xf32, #tpu.memory_space<vmem>>, %arg14: memref<1x128xf32, #tpu.memory_space<vmem>>, %arg15: memref<1x8x128xf32, #tpu.memory_space<vmem>>) attributes {dimension_semantics = [#tpu.dimension_semantics<parallel>], iteration_bounds = array<i64: 2>, scalar_prefetch = 0 : i64, scratch_operands = 0 : i64, tpu.core_type = #tpu.core_type<tc>, window_params = [{transform_indices = @transform_0, window_bounds = array<i64: 1, 8, 128>}, {transform_indices = @transform_1, window_bounds = array<i64: 1, 16, 128>}, {transform_indices = @transform_2, window_bounds = array<i64: 1, 16, 128>}, {transform_indices = @transform_3, window_bounds = array<i64: 1, 1, 16>}, {pipeline_mode = #tpu.pipeline_mode<synchronous>, transform_indices = @transform_4, window_bounds = array<i64: 128, 128>}, {pipeline_mode = #tpu.pipeline_mode<synchronous>, transform_indices = @transform_5, window_bounds = array<i64: 1, 128>}, {pipeline_mode = #tpu.pipeline_mode<synchronous>, transform_indices = @transform_6, window_bounds = array<i64: 128, 128>}, {pipeline_mode = #tpu.pipeline_mode<synchronous>, transform_indices = @transform_7, window_bounds = array<i64: 1, 128>}, {pipeline_mode = #tpu.pipeline_mode<synchronous>, transform_indices = @transform_8, window_bounds = array<i64: 128, 128>}, {pipeline_mode = #tpu.pipeline_mode<synchronous>, transform_indices = @transform_9, window_bounds = array<i64: 1, 128>}, {pipeline_mode = #tpu.pipeline_mode<synchronous>, transform_indices = @transform_10, window_bounds = array<i64: 128, 128>}, {pipeline_mode = #tpu.pipeline_mode<synchronous>, transform_indices = @transform_11, window_bounds = array<i64: 1, 128>}, {pipeline_mode = #tpu.pipeline_mode<synchronous>, transform_indices = @transform_12, window_bounds = array<i64: 1, 128>}, {pipeline_mode = #tpu.pipeline_mode<synchronous>, transform_indices = @transform_13, window_bounds = array<i64: 1, 128>}, {transform_indices = @transform_14, window_bounds = array<i64: 1, 8, 128>}]} {
    %c0 = arith.constant 0 : index
    %c0_0 = arith.constant 0 : index
    %c0_1 = arith.constant 0 : index
    %0 = vector.load %arg1[%c0, %c0_0, %c0_1] : memref<1x8x128xf32, #tpu.memory_space<vmem>>, vector<1x8x128xf32>
    %1 = vector.shape_cast %0 : vector<1x8x128xf32> to vector<8x128xf32>
    %c0_2 = arith.constant 0 : index
    %c0_3 = arith.constant 0 : index
    %c0_4 = arith.constant 0 : index
    %2 = vector.load %arg2[%c0_2, %c0_3, %c0_4] : memref<1x16x128xf32, #tpu.memory_space<vmem>>, vector<1x16x128xf32>
    %3 = vector.shape_cast %2 : vector<1x16x128xf32> to vector<16x128xf32>
    %c0_5 = arith.constant 0 : index
    %c0_6 = arith.constant 0 : index
    %c0_7 = arith.constant 0 : index
    %4 = vector.load %arg3[%c0_5, %c0_6, %c0_7] : memref<1x16x128xf32, #tpu.memory_space<vmem>>, vector<1x16x128xf32>
    %5 = vector.shape_cast %4 : vector<1x16x128xf32> to vector<16x128xf32>
    %c0_8 = arith.constant 0 : index
    %c0_9 = arith.constant 0 : index
    %c0_10 = arith.constant 0 : index
    %6 = vector.load %arg4[%c0_8, %c0_9, %c0_10] : memref<1x1x16xf32, #tpu.memory_space<vmem>>, vector<1x1x16xf32>
    %7 = vector.shape_cast %6 : vector<1x1x16xf32> to vector<1x16xf32>
    %8 = arith.truncf %1 : vector<8x128xf32> to vector<8x128xbf16>
    %c0_11 = arith.constant 0 : index
    %c0_12 = arith.constant 0 : index
    %9 = vector.load %arg5[%c0_11, %c0_12] : memref<128x128xbf16, #tpu.memory_space<vmem>>, vector<128x128xbf16>
    %cst = arith.constant dense<0.000000e+00> : vector<8x128xf32>
    %10 = tpu.matmul %8, %9, %cst {dimension_numbers = #tpu.dot_dimension_numbers<[1], [0], [0], [1], [0, 0, 1, 1], [], []>} : vector<8x128xbf16>, vector<128x128xbf16>, vector<8x128xf32> -> vector<8x128xf32>
    %c0_13 = arith.constant 0 : index
    %c0_14 = arith.constant 0 : index
    %11 = vector.load %arg6[%c0_13, %c0_14] : memref<1x128xf32, #tpu.memory_space<vmem>>, vector<1x128xf32>
    %12 = vector.broadcast %11 : vector<1x128xf32> to vector<8x128xf32>
    %13 = arith.addf %10, %12 : vector<8x128xf32>
    %14 = arith.truncf %3 : vector<16x128xf32> to vector<16x128xbf16>
    %c0_15 = arith.constant 0 : index
    %c0_16 = arith.constant 0 : index
    %15 = vector.load %arg7[%c0_15, %c0_16] : memref<128x128xbf16, #tpu.memory_space<vmem>>, vector<128x128xbf16>
    %cst_17 = arith.constant dense<0.000000e+00> : vector<16x128xf32>
    %16 = tpu.matmul %14, %15, %cst_17 {dimension_numbers = #tpu.dot_dimension_numbers<[1], [0], [0], [1], [0, 0, 1, 1], [], []>} : vector<16x128xbf16>, vector<128x128xbf16>, vector<16x128xf32> -> vector<16x128xf32>
    %c0_18 = arith.constant 0 : index
    %c0_19 = arith.constant 0 : index
    %17 = vector.load %arg8[%c0_18, %c0_19] : memref<1x128xf32, #tpu.memory_space<vmem>>, vector<1x128xf32>
    %18 = vector.broadcast %17 : vector<1x128xf32> to vector<16x128xf32>
    %19 = arith.addf %16, %18 : vector<16x128xf32>
    %20 = arith.truncf %5 : vector<16x128xf32> to vector<16x128xbf16>
    %c0_20 = arith.constant 0 : index
    %c0_21 = arith.constant 0 : index
    %21 = vector.load %arg9[%c0_20, %c0_21] : memref<128x128xbf16, #tpu.memory_space<vmem>>, vector<128x128xbf16>
    %cst_22 = arith.constant dense<0.000000e+00> : vector<16x128xf32>
    %22 = tpu.matmul %20, %21, %cst_22 {dimension_numbers = #tpu.dot_dimension_numbers<[1], [0], [0], [1], [0, 0, 1, 1], [], []>} : vector<16x128xbf16>, vector<128x128xbf16>, vector<16x128xf32> -> vector<16x128xf32>
    %c0_23 = arith.constant 0 : index
    %c0_24 = arith.constant 0 : index
    %23 = vector.load %arg10[%c0_23, %c0_24] : memref<1x128xf32, #tpu.memory_space<vmem>>, vector<1x128xf32>
    %24 = vector.broadcast %23 : vector<1x128xf32> to vector<16x128xf32>
    %25 = arith.addf %22, %24 : vector<16x128xf32>
    %26 = vector.extract_strided_slice %13 {offsets = [0, 0], sizes = [8, 16], strides = [1, 1]} : vector<8x128xf32> to vector<8x16xf32>
    %27 = vector.extract_strided_slice %19 {offsets = [0, 0], sizes = [16, 16], strides = [1, 1]} : vector<16x128xf32> to vector<16x16xf32>
    %28 = vector.extract_strided_slice %25 {offsets = [0, 0], sizes = [16, 16], strides = [1, 1]} : vector<16x128xf32> to vector<16x16xf32>
    %cst_25 = arith.constant dense<0.000000e+00> : vector<8x16xf32>
    %29 = tpu.matmul %26, %27, %cst_25 {dimension_numbers = #tpu.dot_dimension_numbers<[1], [1], [0], [0], [0, 0, 1, 0], [], []>} : vector<8x16xf32>, vector<16x16xf32>, vector<8x16xf32> -> vector<8x16xf32>
    %cst_26 = arith.constant 2.500000e-01 : f32
    %30 = vector.broadcast %cst_26 : f32 to vector<8x16xf32>
    %31 = arith.mulf %29, %30 : vector<8x16xf32>
    %32 = vector.broadcast %7 : vector<1x16xf32> to vector<8x16xf32>
    %33 = arith.addf %31, %32 : vector<8x16xf32>
    %cst_27 = arith.constant dense<0xFF800000> : vector<8xf32>
    %34 = vector.multi_reduction <maximumf>, %33, %cst_27 [1] : vector<8x16xf32> to vector<8xf32>
    %35 = vector.shape_cast %34 : vector<8xf32> to vector<8x1xf32>
    %36 = vector.broadcast %35 : vector<8x1xf32> to vector<8x16xf32>
    %37 = arith.subf %33, %36 : vector<8x16xf32>
    %38 = math.exp %37 : vector<8x16xf32>
    %cst_28 = arith.constant dense<0.000000e+00> : vector<8xf32>
    %39 = vector.multi_reduction <add>, %38, %cst_28 [1] : vector<8x16xf32> to vector<8xf32>
    %40 = vector.shape_cast %39 : vector<8xf32> to vector<8x1xf32>
    %41 = vector.broadcast %40 : vector<8x1xf32> to vector<8x16xf32>
    %42 = arith.divf %38, %41 : vector<8x16xf32>
    %cst_29 = arith.constant dense<0.000000e+00> : vector<8x16xf32>
    %43 = tpu.matmul %42, %28, %cst_29 {dimension_numbers = #tpu.dot_dimension_numbers<[1], [0], [0], [1], [0, 0, 1, 1], [], []>} : vector<8x16xf32>, vector<16x16xf32>, vector<8x16xf32> -> vector<8x16xf32>
    %44 = vector.extract_strided_slice %13 {offsets = [0, 16], sizes = [8, 16], strides = [1, 1]} : vector<8x128xf32> to vector<8x16xf32>
    %45 = vector.extract_strided_slice %19 {offsets = [0, 16], sizes = [16, 16], strides = [1, 1]} : vector<16x128xf32> to vector<16x16xf32>
    %46 = vector.extract_strided_slice %25 {offsets = [0, 16], sizes = [16, 16], strides = [1, 1]} : vector<16x128xf32> to vector<16x16xf32>
    %cst_30 = arith.constant dense<0.000000e+00> : vector<8x16xf32>
    %47 = tpu.matmul %44, %45, %cst_30 {dimension_numbers = #tpu.dot_dimension_numbers<[1], [1], [0], [0], [0, 0, 1, 0], [], []>} : vector<8x16xf32>, vector<16x16xf32>, vector<8x16xf32> -> vector<8x16xf32>
    %cst_31 = arith.constant 2.500000e-01 : f32
    %48 = vector.broadcast %cst_31 : f32 to vector<8x16xf32>
    %49 = arith.mulf %47, %48 : vector<8x16xf32>
    %50 = vector.broadcast %7 : vector<1x16xf32> to vector<8x16xf32>
    %51 = arith.addf %49, %50 : vector<8x16xf32>
    %cst_32 = arith.constant dense<0xFF800000> : vector<8xf32>
    %52 = vector.multi_reduction <maximumf>, %51, %cst_32 [1] : vector<8x16xf32> to vector<8xf32>
    %53 = vector.shape_cast %52 : vector<8xf32> to vector<8x1xf32>
    %54 = vector.broadcast %53 : vector<8x1xf32> to vector<8x16xf32>
    %55 = arith.subf %51, %54 : vector<8x16xf32>
    %56 = math.exp %55 : vector<8x16xf32>
    %cst_33 = arith.constant dense<0.000000e+00> : vector<8xf32>
    %57 = vector.multi_reduction <add>, %56, %cst_33 [1] : vector<8x16xf32> to vector<8xf32>
    %58 = vector.shape_cast %57 : vector<8xf32> to vector<8x1xf32>
    %59 = vector.broadcast %58 : vector<8x1xf32> to vector<8x16xf32>
    %60 = arith.divf %56, %59 : vector<8x16xf32>
    %cst_34 = arith.constant dense<0.000000e+00> : vector<8x16xf32>
    %61 = tpu.matmul %60, %46, %cst_34 {dimension_numbers = #tpu.dot_dimension_numbers<[1], [0], [0], [1], [0, 0, 1, 1], [], []>} : vector<8x16xf32>, vector<16x16xf32>, vector<8x16xf32> -> vector<8x16xf32>
    %62 = vector.extract_strided_slice %13 {offsets = [0, 32], sizes = [8, 16], strides = [1, 1]} : vector<8x128xf32> to vector<8x16xf32>
    %63 = vector.extract_strided_slice %19 {offsets = [0, 32], sizes = [16, 16], strides = [1, 1]} : vector<16x128xf32> to vector<16x16xf32>
    %64 = vector.extract_strided_slice %25 {offsets = [0, 32], sizes = [16, 16], strides = [1, 1]} : vector<16x128xf32> to vector<16x16xf32>
    %cst_35 = arith.constant dense<0.000000e+00> : vector<8x16xf32>
    %65 = tpu.matmul %62, %63, %cst_35 {dimension_numbers = #tpu.dot_dimension_numbers<[1], [1], [0], [0], [0, 0, 1, 0], [], []>} : vector<8x16xf32>, vector<16x16xf32>, vector<8x16xf32> -> vector<8x16xf32>
    %cst_36 = arith.constant 2.500000e-01 : f32
    %66 = vector.broadcast %cst_36 : f32 to vector<8x16xf32>
    %67 = arith.mulf %65, %66 : vector<8x16xf32>
    %68 = vector.broadcast %7 : vector<1x16xf32> to vector<8x16xf32>
    %69 = arith.addf %67, %68 : vector<8x16xf32>
    %cst_37 = arith.constant dense<0xFF800000> : vector<8xf32>
    %70 = vector.multi_reduction <maximumf>, %69, %cst_37 [1] : vector<8x16xf32> to vector<8xf32>
    %71 = vector.shape_cast %70 : vector<8xf32> to vector<8x1xf32>
    %72 = vector.broadcast %71 : vector<8x1xf32> to vector<8x16xf32>
    %73 = arith.subf %69, %72 : vector<8x16xf32>
    %74 = math.exp %73 : vector<8x16xf32>
    %cst_38 = arith.constant dense<0.000000e+00> : vector<8xf32>
    %75 = vector.multi_reduction <add>, %74, %cst_38 [1] : vector<8x16xf32> to vector<8xf32>
    %76 = vector.shape_cast %75 : vector<8xf32> to vector<8x1xf32>
    %77 = vector.broadcast %76 : vector<8x1xf32> to vector<8x16xf32>
    %78 = arith.divf %74, %77 : vector<8x16xf32>
    %cst_39 = arith.constant dense<0.000000e+00> : vector<8x16xf32>
    %79 = tpu.matmul %78, %64, %cst_39 {dimension_numbers = #tpu.dot_dimension_numbers<[1], [0], [0], [1], [0, 0, 1, 1], [], []>} : vector<8x16xf32>, vector<16x16xf32>, vector<8x16xf32> -> vector<8x16xf32>
    %80 = vector.extract_strided_slice %13 {offsets = [0, 48], sizes = [8, 16], strides = [1, 1]} : vector<8x128xf32> to vector<8x16xf32>
    %81 = vector.extract_strided_slice %19 {offsets = [0, 48], sizes = [16, 16], strides = [1, 1]} : vector<16x128xf32> to vector<16x16xf32>
    %82 = vector.extract_strided_slice %25 {offsets = [0, 48], sizes = [16, 16], strides = [1, 1]} : vector<16x128xf32> to vector<16x16xf32>
    %cst_40 = arith.constant dense<0.000000e+00> : vector<8x16xf32>
    %83 = tpu.matmul %80, %81, %cst_40 {dimension_numbers = #tpu.dot_dimension_numbers<[1], [1], [0], [0], [0, 0, 1, 0], [], []>} : vector<8x16xf32>, vector<16x16xf32>, vector<8x16xf32> -> vector<8x16xf32>
    %cst_41 = arith.constant 2.500000e-01 : f32
    %84 = vector.broadcast %cst_41 : f32 to vector<8x16xf32>
    %85 = arith.mulf %83, %84 : vector<8x16xf32>
    %86 = vector.broadcast %7 : vector<1x16xf32> to vector<8x16xf32>
    %87 = arith.addf %85, %86 : vector<8x16xf32>
    %cst_42 = arith.constant dense<0xFF800000> : vector<8xf32>
    %88 = vector.multi_reduction <maximumf>, %87, %cst_42 [1] : vector<8x16xf32> to vector<8xf32>
    %89 = vector.shape_cast %88 : vector<8xf32> to vector<8x1xf32>
    %90 = vector.broadcast %89 : vector<8x1xf32> to vector<8x16xf32>
    %91 = arith.subf %87, %90 : vector<8x16xf32>
    %92 = math.exp %91 : vector<8x16xf32>
    %cst_43 = arith.constant dense<0.000000e+00> : vector<8xf32>
    %93 = vector.multi_reduction <add>, %92, %cst_43 [1] : vector<8x16xf32> to vector<8xf32>
    %94 = vector.shape_cast %93 : vector<8xf32> to vector<8x1xf32>
    %95 = vector.broadcast %94 : vector<8x1xf32> to vector<8x16xf32>
    %96 = arith.divf %92, %95 : vector<8x16xf32>
    %cst_44 = arith.constant dense<0.000000e+00> : vector<8x16xf32>
    %97 = tpu.matmul %96, %82, %cst_44 {dimension_numbers = #tpu.dot_dimension_numbers<[1], [0], [0], [1], [0, 0, 1, 1], [], []>} : vector<8x16xf32>, vector<16x16xf32>, vector<8x16xf32> -> vector<8x16xf32>
    %98 = vector.extract_strided_slice %13 {offsets = [0, 64], sizes = [8, 16], strides = [1, 1]} : vector<8x128xf32> to vector<8x16xf32>
    %99 = vector.extract_strided_slice %19 {offsets = [0, 64], sizes = [16, 16], strides = [1, 1]} : vector<16x128xf32> to vector<16x16xf32>
    %100 = vector.extract_strided_slice %25 {offsets = [0, 64], sizes = [16, 16], strides = [1, 1]} : vector<16x128xf32> to vector<16x16xf32>
    %cst_45 = arith.constant dense<0.000000e+00> : vector<8x16xf32>
    %101 = tpu.matmul %98, %99, %cst_45 {dimension_numbers = #tpu.dot_dimension_numbers<[1], [1], [0], [0], [0, 0, 1, 0], [], []>} : vector<8x16xf32>, vector<16x16xf32>, vector<8x16xf32> -> vector<8x16xf32>
    %cst_46 = arith.constant 2.500000e-01 : f32
    %102 = vector.broadcast %cst_46 : f32 to vector<8x16xf32>
    %103 = arith.mulf %101, %102 : vector<8x16xf32>
    %104 = vector.broadcast %7 : vector<1x16xf32> to vector<8x16xf32>
    %105 = arith.addf %103, %104 : vector<8x16xf32>
    %cst_47 = arith.constant dense<0xFF800000> : vector<8xf32>
    %106 = vector.multi_reduction <maximumf>, %105, %cst_47 [1] : vector<8x16xf32> to vector<8xf32>
    %107 = vector.shape_cast %106 : vector<8xf32> to vector<8x1xf32>
    %108 = vector.broadcast %107 : vector<8x1xf32> to vector<8x16xf32>
    %109 = arith.subf %105, %108 : vector<8x16xf32>
    %110 = math.exp %109 : vector<8x16xf32>
    %cst_48 = arith.constant dense<0.000000e+00> : vector<8xf32>
    %111 = vector.multi_reduction <add>, %110, %cst_48 [1] : vector<8x16xf32> to vector<8xf32>
    %112 = vector.shape_cast %111 : vector<8xf32> to vector<8x1xf32>
    %113 = vector.broadcast %112 : vector<8x1xf32> to vector<8x16xf32>
    %114 = arith.divf %110, %113 : vector<8x16xf32>
    %cst_49 = arith.constant dense<0.000000e+00> : vector<8x16xf32>
    %115 = tpu.matmul %114, %100, %cst_49 {dimension_numbers = #tpu.dot_dimension_numbers<[1], [0], [0], [1], [0, 0, 1, 1], [], []>} : vector<8x16xf32>, vector<16x16xf32>, vector<8x16xf32> -> vector<8x16xf32>
    %116 = vector.extract_strided_slice %13 {offsets = [0, 80], sizes = [8, 16], strides = [1, 1]} : vector<8x128xf32> to vector<8x16xf32>
    %117 = vector.extract_strided_slice %19 {offsets = [0, 80], sizes = [16, 16], strides = [1, 1]} : vector<16x128xf32> to vector<16x16xf32>
    %118 = vector.extract_strided_slice %25 {offsets = [0, 80], sizes = [16, 16], strides = [1, 1]} : vector<16x128xf32> to vector<16x16xf32>
    %cst_50 = arith.constant dense<0.000000e+00> : vector<8x16xf32>
    %119 = tpu.matmul %116, %117, %cst_50 {dimension_numbers = #tpu.dot_dimension_numbers<[1], [1], [0], [0], [0, 0, 1, 0], [], []>} : vector<8x16xf32>, vector<16x16xf32>, vector<8x16xf32> -> vector<8x16xf32>
    %cst_51 = arith.constant 2.500000e-01 : f32
    %120 = vector.broadcast %cst_51 : f32 to vector<8x16xf32>
    %121 = arith.mulf %119, %120 : vector<8x16xf32>
    %122 = vector.broadcast %7 : vector<1x16xf32> to vector<8x16xf32>
    %123 = arith.addf %121, %122 : vector<8x16xf32>
    %cst_52 = arith.constant dense<0xFF800000> : vector<8xf32>
    %124 = vector.multi_reduction <maximumf>, %123, %cst_52 [1] : vector<8x16xf32> to vector<8xf32>
    %125 = vector.shape_cast %124 : vector<8xf32> to vector<8x1xf32>
    %126 = vector.broadcast %125 : vector<8x1xf32> to vector<8x16xf32>
    %127 = arith.subf %123, %126 : vector<8x16xf32>
    %128 = math.exp %127 : vector<8x16xf32>
    %cst_53 = arith.constant dense<0.000000e+00> : vector<8xf32>
    %129 = vector.multi_reduction <add>, %128, %cst_53 [1] : vector<8x16xf32> to vector<8xf32>
    %130 = vector.shape_cast %129 : vector<8xf32> to vector<8x1xf32>
    %131 = vector.broadcast %130 : vector<8x1xf32> to vector<8x16xf32>
    %132 = arith.divf %128, %131 : vector<8x16xf32>
    %cst_54 = arith.constant dense<0.000000e+00> : vector<8x16xf32>
    %133 = tpu.matmul %132, %118, %cst_54 {dimension_numbers = #tpu.dot_dimension_numbers<[1], [0], [0], [1], [0, 0, 1, 1], [], []>} : vector<8x16xf32>, vector<16x16xf32>, vector<8x16xf32> -> vector<8x16xf32>
    %134 = vector.extract_strided_slice %13 {offsets = [0, 96], sizes = [8, 16], strides = [1, 1]} : vector<8x128xf32> to vector<8x16xf32>
    %135 = vector.extract_strided_slice %19 {offsets = [0, 96], sizes = [16, 16], strides = [1, 1]} : vector<16x128xf32> to vector<16x16xf32>
    %136 = vector.extract_strided_slice %25 {offsets = [0, 96], sizes = [16, 16], strides = [1, 1]} : vector<16x128xf32> to vector<16x16xf32>
    %cst_55 = arith.constant dense<0.000000e+00> : vector<8x16xf32>
    %137 = tpu.matmul %134, %135, %cst_55 {dimension_numbers = #tpu.dot_dimension_numbers<[1], [1], [0], [0], [0, 0, 1, 0], [], []>} : vector<8x16xf32>, vector<16x16xf32>, vector<8x16xf32> -> vector<8x16xf32>
    %cst_56 = arith.constant 2.500000e-01 : f32
    %138 = vector.broadcast %cst_56 : f32 to vector<8x16xf32>
    %139 = arith.mulf %137, %138 : vector<8x16xf32>
    %140 = vector.broadcast %7 : vector<1x16xf32> to vector<8x16xf32>
    %141 = arith.addf %139, %140 : vector<8x16xf32>
    %cst_57 = arith.constant dense<0xFF800000> : vector<8xf32>
    %142 = vector.multi_reduction <maximumf>, %141, %cst_57 [1] : vector<8x16xf32> to vector<8xf32>
    %143 = vector.shape_cast %142 : vector<8xf32> to vector<8x1xf32>
    %144 = vector.broadcast %143 : vector<8x1xf32> to vector<8x16xf32>
    %145 = arith.subf %141, %144 : vector<8x16xf32>
    %146 = math.exp %145 : vector<8x16xf32>
    %cst_58 = arith.constant dense<0.000000e+00> : vector<8xf32>
    %147 = vector.multi_reduction <add>, %146, %cst_58 [1] : vector<8x16xf32> to vector<8xf32>
    %148 = vector.shape_cast %147 : vector<8xf32> to vector<8x1xf32>
    %149 = vector.broadcast %148 : vector<8x1xf32> to vector<8x16xf32>
    %150 = arith.divf %146, %149 : vector<8x16xf32>
    %cst_59 = arith.constant dense<0.000000e+00> : vector<8x16xf32>
    %151 = tpu.matmul %150, %136, %cst_59 {dimension_numbers = #tpu.dot_dimension_numbers<[1], [0], [0], [1], [0, 0, 1, 1], [], []>} : vector<8x16xf32>, vector<16x16xf32>, vector<8x16xf32> -> vector<8x16xf32>
    %152 = vector.extract_strided_slice %13 {offsets = [0, 112], sizes = [8, 16], strides = [1, 1]} : vector<8x128xf32> to vector<8x16xf32>
    %153 = vector.extract_strided_slice %19 {offsets = [0, 112], sizes = [16, 16], strides = [1, 1]} : vector<16x128xf32> to vector<16x16xf32>
    %154 = vector.extract_strided_slice %25 {offsets = [0, 112], sizes = [16, 16], strides = [1, 1]} : vector<16x128xf32> to vector<16x16xf32>
    %cst_60 = arith.constant dense<0.000000e+00> : vector<8x16xf32>
    %155 = tpu.matmul %152, %153, %cst_60 {dimension_numbers = #tpu.dot_dimension_numbers<[1], [1], [0], [0], [0, 0, 1, 0], [], []>} : vector<8x16xf32>, vector<16x16xf32>, vector<8x16xf32> -> vector<8x16xf32>
    %cst_61 = arith.constant 2.500000e-01 : f32
    %156 = vector.broadcast %cst_61 : f32 to vector<8x16xf32>
    %157 = arith.mulf %155, %156 : vector<8x16xf32>
    %158 = vector.broadcast %7 : vector<1x16xf32> to vector<8x16xf32>
    %159 = arith.addf %157, %158 : vector<8x16xf32>
    %cst_62 = arith.constant dense<0xFF800000> : vector<8xf32>
    %160 = vector.multi_reduction <maximumf>, %159, %cst_62 [1] : vector<8x16xf32> to vector<8xf32>
    %161 = vector.shape_cast %160 : vector<8xf32> to vector<8x1xf32>
    %162 = vector.broadcast %161 : vector<8x1xf32> to vector<8x16xf32>
    %163 = arith.subf %159, %162 : vector<8x16xf32>
    %164 = math.exp %163 : vector<8x16xf32>
    %cst_63 = arith.constant dense<0.000000e+00> : vector<8xf32>
    %165 = vector.multi_reduction <add>, %164, %cst_63 [1] : vector<8x16xf32> to vector<8xf32>
    %166 = vector.shape_cast %165 : vector<8xf32> to vector<8x1xf32>
    %167 = vector.broadcast %166 : vector<8x1xf32> to vector<8x16xf32>
    %168 = arith.divf %164, %167 : vector<8x16xf32>
    %cst_64 = arith.constant dense<0.000000e+00> : vector<8x16xf32>
    %169 = tpu.matmul %168, %154, %cst_64 {dimension_numbers = #tpu.dot_dimension_numbers<[1], [0], [0], [1], [0, 0, 1, 1], [], []>} : vector<8x16xf32>, vector<16x16xf32>, vector<8x16xf32> -> vector<8x16xf32>
    %170 = tpu.concatenate %43, %61, %79, %97, %115, %133, %151, %169 in 1 : vector<8x16xf32>, vector<8x16xf32>, vector<8x16xf32>, vector<8x16xf32>, vector<8x16xf32>, vector<8x16xf32>, vector<8x16xf32>, vector<8x16xf32> -> vector<8x128xf32>
    %171 = arith.truncf %170 : vector<8x128xf32> to vector<8x128xbf16>
    %c0_65 = arith.constant 0 : index
    %c0_66 = arith.constant 0 : index
    %172 = vector.load %arg11[%c0_65, %c0_66] : memref<128x128xbf16, #tpu.memory_space<vmem>>, vector<128x128xbf16>
    %cst_67 = arith.constant dense<0.000000e+00> : vector<8x128xf32>
    %173 = tpu.matmul %171, %172, %cst_67 {dimension_numbers = #tpu.dot_dimension_numbers<[1], [0], [0], [1], [0, 0, 1, 1], [], []>} : vector<8x128xbf16>, vector<128x128xbf16>, vector<8x128xf32> -> vector<8x128xf32>
    %c0_68 = arith.constant 0 : index
    %c0_69 = arith.constant 0 : index
    %174 = vector.load %arg12[%c0_68, %c0_69] : memref<1x128xf32, #tpu.memory_space<vmem>>, vector<1x128xf32>
    %175 = vector.broadcast %174 : vector<1x128xf32> to vector<8x128xf32>
    %176 = arith.addf %173, %175 : vector<8x128xf32>
    %177 = arith.addf %1, %176 : vector<8x128xf32>
    %c0_70 = arith.constant 0 : index
    %c0_71 = arith.constant 0 : index
    %178 = vector.load %arg13[%c0_70, %c0_71] : memref<1x128xf32, #tpu.memory_space<vmem>>, vector<1x128xf32>
    %c0_72 = arith.constant 0 : index
    %c0_73 = arith.constant 0 : index
    %179 = vector.load %arg14[%c0_72, %c0_73] : memref<1x128xf32, #tpu.memory_space<vmem>>, vector<1x128xf32>
    %cst_74 = arith.constant dense<0.000000e+00> : vector<8xf32>
    %180 = vector.multi_reduction <add>, %177, %cst_74 [1] : vector<8x128xf32> to vector<8xf32>
    %181 = vector.shape_cast %180 : vector<8xf32> to vector<8x1xf32>
    %cst_75 = arith.constant 1.280000e+02 : f32
    %182 = vector.broadcast %cst_75 : f32 to vector<8x1xf32>
    %183 = arith.divf %181, %182 : vector<8x1xf32>
    %184 = vector.broadcast %183 : vector<8x1xf32> to vector<8x128xf32>
    %185 = arith.subf %177, %184 : vector<8x128xf32>
    %186 = arith.mulf %185, %185 : vector<8x128xf32>
    %cst_76 = arith.constant dense<0.000000e+00> : vector<8xf32>
    %187 = vector.multi_reduction <add>, %186, %cst_76 [1] : vector<8x128xf32> to vector<8xf32>
    %188 = vector.shape_cast %187 : vector<8xf32> to vector<8x1xf32>
    %cst_77 = arith.constant 1.280000e+02 : f32
    %189 = vector.broadcast %cst_77 : f32 to vector<8x1xf32>
    %190 = arith.divf %188, %189 : vector<8x1xf32>
    %191 = vector.broadcast %183 : vector<8x1xf32> to vector<8x128xf32>
    %192 = arith.subf %177, %191 : vector<8x128xf32>
    %cst_78 = arith.constant 9.99999974E-6 : f32
    %193 = vector.broadcast %cst_78 : f32 to vector<8x1xf32>
    %194 = arith.addf %190, %193 : vector<8x1xf32>
    %195 = math.rsqrt %194 : vector<8x1xf32>
    %196 = vector.broadcast %195 : vector<8x1xf32> to vector<8x128xf32>
    %197 = arith.mulf %192, %196 : vector<8x128xf32>
    %198 = vector.broadcast %178 : vector<1x128xf32> to vector<8x128xf32>
    %199 = arith.mulf %197, %198 : vector<8x128xf32>
    %200 = vector.broadcast %179 : vector<1x128xf32> to vector<8x128xf32>
    %201 = arith.addf %199, %200 : vector<8x128xf32>
    %202 = vector.shape_cast %201 : vector<8x128xf32> to vector<1x8x128xf32>
    %c0_79 = arith.constant 0 : index
    %c0_80 = arith.constant 0 : index
    %c0_81 = arith.constant 0 : index
    %203 = vector.load %arg15[%c0_79, %c0_80, %c0_81] : memref<1x8x128xf32, #tpu.memory_space<vmem>>, vector<1x8x128xf32>
    tpu.vector_store %arg15[%c0_79, %c0_80, %c0_81], %202 {strides = array<i32>} : memref<1x8x128xf32, #tpu.memory_space<vmem>>, vector<1x8x128xf32>,
    return
  }
  func.func @transform_0(%arg0: i32) -> (i32, i32, i32) {
    %c0_i32 = arith.constant 0 : i32
    %c0_i32_0 = arith.constant 0 : i32
    %c0_i32_1 = arith.constant 0 : i32
    return %arg0, %c0_i32, %c0_i32_0 : i32, i32, i32
  }
  func.func @transform_1(%arg0: i32) -> (i32, i32, i32) {
    %c0_i32 = arith.constant 0 : i32
    %c0_i32_0 = arith.constant 0 : i32
    %c0_i32_1 = arith.constant 0 : i32
    return %arg0, %c0_i32, %c0_i32_0 : i32, i32, i32
  }
  func.func @transform_2(%arg0: i32) -> (i32, i32, i32) {
    %c0_i32 = arith.constant 0 : i32
    %c0_i32_0 = arith.constant 0 : i32
    %c0_i32_1 = arith.constant 0 : i32
    return %arg0, %c0_i32, %c0_i32_0 : i32, i32, i32
  }
  func.func @transform_3(%arg0: i32) -> (i32, i32, i32) {
    %c0_i32 = arith.constant 0 : i32
    %c0_i32_0 = arith.constant 0 : i32
    %c0_i32_1 = arith.constant 0 : i32
    return %arg0, %c0_i32, %c0_i32_0 : i32, i32, i32
  }
  func.func @transform_4(%arg0: i32) -> (i32, i32) {
    %c0_i32 = arith.constant 0 : i32
    %c0_i32_0 = arith.constant 0 : i32
    %c0_i32_1 = arith.constant 0 : i32
    return %c0_i32, %c0_i32_0 : i32, i32
  }
  func.func @transform_5(%arg0: i32) -> (i32, i32) {
    %c0_i32 = arith.constant 0 : i32
    %c0_i32_0 = arith.constant 0 : i32
    %c0_i32_1 = arith.constant 0 : i32
    return %c0_i32, %c0_i32_0 : i32, i32
  }
  func.func @transform_6(%arg0: i32) -> (i32, i32) {
    %c0_i32 = arith.constant 0 : i32
    %c0_i32_0 = arith.constant 0 : i32
    %c0_i32_1 = arith.constant 0 : i32
    return %c0_i32, %c0_i32_0 : i32, i32
  }
  func.func @transform_7(%arg0: i32) -> (i32, i32) {
    %c0_i32 = arith.constant 0 : i32
    %c0_i32_0 = arith.constant 0 : i32
    %c0_i32_1 = arith.constant 0 : i32
    return %c0_i32, %c0_i32_0 : i32, i32
  }
  func.func @transform_8(%arg0: i32) -> (i32, i32) {
    %c0_i32 = arith.constant 0 : i32
    %c0_i32_0 = arith.constant 0 : i32
    %c0_i32_1 = arith.constant 0 : i32
    return %c0_i32, %c0_i32_0 : i32, i32
  }
  func.func @transform_9(%arg0: i32) -> (i32, i32) {
    %c0_i32 = arith.constant 0 : i32
    %c0_i32_0 = arith.constant 0 : i32
    %c0_i32_1 = arith.constant 0 : i32
    return %c0_i32, %c0_i32_0 : i32, i32
  }
  func.func @transform_10(%arg0: i32) -> (i32, i32) {
    %c0_i32 = arith.constant 0 : i32
    %c0_i32_0 = arith.constant 0 : i32
    %c0_i32_1 = arith.constant 0 : i32
    return %c0_i32, %c0_i32_0 : i32, i32
  }
  func.func @transform_11(%arg0: i32) -> (i32, i32) {
    %c0_i32 = arith.constant 0 : i32
    %c0_i32_0 = arith.constant 0 : i32
    %c0_i32_1 = arith.constant 0 : i32
    return %c0_i32, %c0_i32_0 : i32, i32
  }
  func.func @transform_12(%arg0: i32) -> (i32, i32) {
    %c0_i32 = arith.constant 0 : i32
    %c0_i32_0 = arith.constant 0 : i32
    %c0_i32_1 = arith.constant 0 : i32
    return %c0_i32, %c0_i32_0 : i32, i32
  }
  func.func @transform_13(%arg0: i32) -> (i32, i32) {
    %c0_i32 = arith.constant 0 : i32
    %c0_i32_0 = arith.constant 0 : i32
    %c0_i32_1 = arith.constant 0 : i32
    return %c0_i32, %c0_i32_0 : i32, i32
  }
  func.func @transform_14(%arg0: i32) -> (i32, i32, i32) {
    %c0_i32 = arith.constant 0 : i32
    %c0_i32_0 = arith.constant 0 : i32
    %c0_i32_1 = arith.constant 0 : i32
    return %arg0, %c0_i32, %c0_i32_0 : i32, i32, i32
  }
}

</mosaic_0001>

<llo_original>
// kernel: cross_modal_attention.1
$region0: #{cross_modal_attention.1}
  #allocation0 [shape = 'u32[]', space=smem, size = 0x4, offset = 0x4, fixed_abs, tag = 'smem constant byte address 0x4 - core index']
  #allocation1 [shape = 'u32[144,128]{1,0:T(1,128)}', space=vmem, size = 0x12000, scoped, tag = 'internal scratch']
  %s0 = inlined_call_operand.vmem [shape: f32[2,8,128], index: 0, kind: input, shape index: {}]
  %s1 = inlined_call_operand.vmem [shape: f32[2,16,128], index: 1, kind: input, shape index: {}]
  %s2 = inlined_call_operand.vmem [shape: f32[2,16,128], index: 2, kind: input, shape index: {}]
  %s3 = inlined_call_operand.vmem [shape: f32[2,1,16], index: 3, kind: input, shape index: {}]
  %s4 = inlined_call_operand.vmem [shape: bf16[128,128], index: 4, kind: input, shape index: {}]
  %s5 = inlined_call_operand.vmem [shape: f32[1,128], index: 5, kind: input, shape index: {}]
  %s6 = inlined_call_operand.vmem [shape: bf16[128,128], index: 6, kind: input, shape index: {}]
  %s7 = inlined_call_operand.vmem [shape: f32[1,128], index: 7, kind: input, shape index: {}]
  %s8 = inlined_call_operand.vmem [shape: bf16[128,128], index: 8, kind: input, shape index: {}]
  %s9 = inlined_call_operand.vmem [shape: f32[1,128], index: 9, kind: input, shape index: {}]
  %s10 = inlined_call_operand.vmem [shape: bf16[128,128], index: 10, kind: input, shape index: {}]
  %s11 = inlined_call_operand.vmem [shape: f32[1,128], index: 11, kind: input, shape index: {}]
  %s12 = inlined_call_operand.vmem [shape: f32[1,128], index: 12, kind: input, shape index: {}]
  %s13 = inlined_call_operand.vmem [shape: f32[1,128], index: 13, kind: input, shape index: {}]
  %s14 = inlined_call_operand.hbm [shape: f32[2,8,128], index: 14, kind: output, shape index: {}]
  %s15 = sld [smem:[#allocation0]]
  $region89: #{cross_modal_attention.1} parent=0
    _
  %s17 = ssub.s32 1, %s15
  %s18 = scalar_select 0, %s17, %s15
  $region1: #{cross_modal_attention.1} parent=0
    #allocation2 [shape = 'u8[8192]{0}', space=vmem, size = 0x2000, scoped, tag = 'output window, operand 0']
    #allocation3 [shape = 's32[2]{0}', space=sflag, size = 0x8, scoped, tag = 'scoped memory for cross_modal_attention.1']
    %19 = vsyncpa [#allocation3], 0
    %s20 = scalar_lea.sflag [#allocation3], 1
    %21 = vsyncpa %s20, 0
    loop: start=0, step=1, limit=4
    $region2: #{cross_modal_attention.1} parent=1 // loop_pre_header
      _
    $region3: #{cross_modal_attention.1} parent=1 // loop_header
      %s23 = sphi 0, %s27
      %p24 = scmp.ge.s32.totalorder %s23, 4
      %s33 = sphi 0, %s35
      %s36 = sphi 0, %s33
      %s37 = sphi 0, %s36
      %s53 = sphi 0, %s37
      %s59 = sphi 0, %s61
      %s62 = sphi 0, %s59
      %s63 = sphi 0, %s62
      %s79 = sphi 0, %s63
      %s85 = sphi 0, %s87
      %s88 = sphi 0, %s85
      %s89 = sphi 0, %s88
      %s105 = sphi 0, %s89
      %s111 = sphi 0, %s113
      %s114 = sphi 0, %s111
      %s115 = sphi 0, %s114
      %s131 = sphi 0, %s115
      %s135 = sphi 0, %s135
      %s137 = sphi 0, %s135
      %s138 = sphi 0, %s137
      %s152 = sphi 0, %s138
      %s156 = sphi 0, %s156
      %s158 = sphi 0, %s156
      %s159 = sphi 0, %s158
      %s173 = sphi 0, %s159
      %s177 = sphi 0, %s177
      %s179 = sphi 0, %s177
      %s180 = sphi 0, %s179
      %s194 = sphi 0, %s180
      %s198 = sphi 0, %s198
      %s200 = sphi 0, %s198
      %s201 = sphi 0, %s200
      %s215 = sphi 0, %s201
      %s219 = sphi 0, %s219
      %s221 = sphi 0, %s219
      %s222 = sphi 0, %s221
      %s236 = sphi 0, %s222
      %s240 = sphi 0, %s240
      %s242 = sphi 0, %s240
      %s243 = sphi 0, %s242
      %s257 = sphi 0, %s243
      %s261 = sphi 0, %s261
      %s263 = sphi 0, %s261
      %s264 = sphi 0, %s263
      %s278 = sphi 0, %s264
      %s282 = sphi 0, %s282
      %s284 = sphi 0, %s282
      %s285 = sphi 0, %s284
      %s299 = sphi 0, %s285
      %s303 = sphi 0, %s303
      %s305 = sphi 0, %s303
      %s306 = sphi 0, %s305
      %s320 = sphi 0, %s306
      %s324 = sphi 0, %s324
      %s326 = sphi 0, %s324
      %s327 = sphi 0, %s326
      %s341 = sphi 0, %s327
      %s347 = sphi 0, %s349
      %s350 = sphi 0, %s347
      %s351 = sphi 0, %s350
      %s367 = sphi 0, %s351
    $region4: #{cross_modal_attention.1} parent=1 // loop_header_branch
      %26 = sbr.rel (%p24) target = $region8
    $region5: #{cross_modal_attention.1} parent=1 // loop_body
      %s28 = ssub.s32 %s23, 1
      %s29 = ssub.s32 %s23, 2
      %s30 = sadd.s32 %s23, 1
      %s31 = ssub.s32 %s23, %s30
      %p32 = scmp.eq.s32.totalorder %s31, 0
      %s34 = sadd.s32 %s33, 1
      %s35 = scalar_select %p32, %s33, %s34
      %p38 = pneg %p32
      %p39 = scmp.eq.s32.totalorder %s23, 1
      %p40 = por %p38, %p39
      %p41 = scmp.ne.s32.totalorder %s33, %s36
      %p42 = scmp.eq.s32.totalorder %s23, 0
      %p43 = por %p41, %p42
      %p44 = scmp.ne.s32.totalorder %s33, %s36
      %p45 = scmp.eq.s32.totalorder %s28, 1
      %p46 = por %p44, %p45
      %p47 = scmp.ne.s32.totalorder %s36, %s37
      %p48 = scmp.eq.s32.totalorder %s28, 0
      %p49 = por %p47, %p48
      %p50 = scmp.ne.s32.totalorder %s36, %s37
      %p51 = scmp.eq.s32.totalorder %s29, 1
      %p52 = por %p50, %p51
      %p54 = scmp.ne.s32.totalorder %s37, %s53
      %p55 = scmp.eq.s32.totalorder %s29, 0
      %p56 = por %p54, %p55
      %s57 = ssub.s32 %s23, %s30
      %p58 = scmp.eq.s32.totalorder %s57, 0
      %s60 = sadd.s32 %s59, 1
      %s61 = scalar_select %p58, %s59, %s60
      %p64 = pneg %p58
      %p65 = scmp.eq.s32.totalorder %s23, 1
      %p66 = por %p64, %p65
      %p67 = scmp.ne.s32.totalorder %s59, %s62
      %p68 = scmp.eq.s32.totalorder %s23, 0
      %p69 = por %p67, %p68
      %p70 = scmp.ne.s32.totalorder %s59, %s62
      %p71 = scmp.eq.s32.totalorder %s28, 1
      %p72 = por %p70, %p71
      %p73 = scmp.ne.s32.totalorder %s62, %s63
      %p74 = scmp.eq.s32.totalorder %s28, 0
      %p75 = por %p73, %p74
      %p76 = scmp.ne.s32.totalorder %s62, %s63
      %p77 = scmp.eq.s32.totalorder %s29, 1
      %p78 = por %p76, %p77
      %p80 = scmp.ne.s32.totalorder %s63, %s79
      %p81 = scmp.eq.s32.totalorder %s29, 0
      %p82 = por %p80, %p81
      %s83 = ssub.s32 %s23, %s30
      %p84 = scmp.eq.s32.totalorder %s83, 0
      %s86 = sadd.s32 %s85, 1
      %s87 = scalar_select %p84, %s85, %s86
      %p90 = pneg %p84
      %p91 = scmp.eq.s32.totalorder %s23, 1
      %p92 = por %p90, %p91
      %p93 = scmp.ne.s32.totalorder %s85, %s88
      %p94 = scmp.eq.s32.totalorder %s23, 0
      %p95 = por %p93, %p94
      %p96 = scmp.ne.s32.totalorder %s85, %s88
      %p97 = scmp.eq.s32.totalorder %s28, 1
      %p98 = por %p96, %p97
      %p99 = scmp.ne.s32.totalorder %s88, %s89
      %p100 = scmp.eq.s32.totalorder %s28, 0
      %p101 = por %p99, %p100
      %p102 = scmp.ne.s32.totalorder %s88, %s89
      %p103 = scmp.eq.s32.totalorder %s29, 1
      %p104 = por %p102, %p103
      %p106 = scmp.ne.s32.totalorder %s89, %s105
      %p107 = scmp.eq.s32.totalorder %s29, 0
      %p108 = por %p106, %p107
      %s109 = ssub.s32 %s23, %s30
      %p110 = scmp.eq.s32.totalorder %s109, 0
      %s112 = sadd.s32 %s111, 1
      %s113 = scalar_select %p110, %s111, %s112
      %p116 = pneg %p110
      %p117 = scmp.eq.s32.totalorder %s23, 1
      %p118 = por %p116, %p117
      %p119 = scmp.ne.s32.totalorder %s111, %s114
      %p120 = scmp.eq.s32.totalorder %s23, 0
      %p121 = por %p119, %p120
      %p122 = scmp.ne.s32.totalorder %s111, %s114
      %p123 = scmp.eq.s32.totalorder %s28, 1
      %p124 = por %p122, %p123
      %p125 = scmp.ne.s32.totalorder %s114, %s115
      %p126 = scmp.eq.s32.totalorder %s28, 0
      %p127 = por %p125, %p126
      %p128 = scmp.ne.s32.totalorder %s114, %s115
      %p129 = scmp.eq.s32.totalorder %s29, 1
      %p130 = por %p128, %p129
      %p132 = scmp.ne.s32.totalorder %s115, %s131
      %p133 = scmp.eq.s32.totalorder %s29, 0
      %p134 = por %p132, %p133
      %s136 = sadd.s32 %s135, 1
      %p139 = scmp.eq.s32.totalorder %s23, 1
      %p140 = scmp.ne.s32.totalorder %s135, %s137
      %p141 = scmp.eq.s32.totalorder %s23, 0
      %p142 = por %p140, %p141
      %p143 = scmp.ne.s32.totalorder %s135, %s137
      %p144 = scmp.eq.s32.totalorder %s28, 1
      %p145 = por %p143, %p144
      %p146 = scmp.ne.s32.totalorder %s137, %s138
      %p147 = scmp.eq.s32.totalorder %s28, 0
      %p148 = por %p146, %p147
      %p149 = scmp.ne.s32.totalorder %s137, %s138
      %p150 = scmp.eq.s32.totalorder %s29, 1
      %p151 = por %p149, %p150
      %p153 = scmp.ne.s32.totalorder %s138, %s152
      %p154 = scmp.eq.s32.totalorder %s29, 0
      %p155 = por %p153, %p154
      %s157 = sadd.s32 %s156, 1
      %p160 = scmp.eq.s32.totalorder %s23, 1
      %p161 = scmp.ne.s32.totalorder %s156, %s158
      %p162 = scmp.eq.s32.totalorder %s23, 0
      %p163 = por %p161, %p162
      %p164 = scmp.ne.s32.totalorder %s156, %s158
      %p165 = scmp.eq.s32.totalorder %s28, 1
      %p166 = por %p164, %p165
      %p167 = scmp.ne.s32.totalorder %s158, %s159
      %p168 = scmp.eq.s32.totalorder %s28, 0
      %p169 = por %p167, %p168
      %p170 = scmp.ne.s32.totalorder %s158, %s159
      %p171 = scmp.eq.s32.totalorder %s29, 1
      %p172 = por %p170, %p171
      %p174 = scmp.ne.s32.totalorder %s159, %s173
      %p175 = scmp.eq.s32.totalorder %s29, 0
      %p176 = por %p174, %p175
      %s178 = sadd.s32 %s177, 1
      %p181 = scmp.eq.s32.totalorder %s23, 1
      %p182 = scmp.ne.s32.totalorder %s177, %s179
      %p183 = scmp.eq.s32.totalorder %s23, 0
      %p184 = por %p182, %p183
      %p185 = scmp.ne.s32.totalorder %s177, %s179
      %p186 = scmp.eq.s32.totalorder %s28, 1
      %p187 = por %p185, %p186
      %p188 = scmp.ne.s32.totalorder %s179, %s180
      %p189 = scmp.eq.s32.totalorder %s28, 0
      %p190 = por %p188, %p189
      %p191 = scmp.ne.s32.totalorder %s179, %s180
      %p192 = scmp.eq.s32.totalorder %s29, 1
      %p193 = por %p191, %p192
      %p195 = scmp.ne.s32.totalorder %s180, %s194
      %p196 = scmp.eq.s32.totalorder %s29, 0
      %p197 = por %p195, %p196
      %s199 = sadd.s32 %s198, 1
      %p202 = scmp.eq.s32.totalorder %s23, 1
      %p203 = scmp.ne.s32.totalorder %s198, %s200
      %p204 = scmp.eq.s32.totalorder %s23, 0
      %p205 = por %p203, %p204
      %p206 = scmp.ne.s32.totalorder %s198, %s200
      %p207 = scmp.eq.s32.totalorder %s28, 1
      %p208 = por %p206, %p207
      %p209 = scmp.ne.s32.totalorder %s200, %s201
      %p210 = scmp.eq.s32.totalorder %s28, 0
      %p211 = por %p209, %p210
      %p212 = scmp.ne.s32.totalorder %s200, %s201
      %p213 = scmp.eq.s32.totalorder %s29, 1
      %p214 = por %p212, %p213
      %p216 = scmp.ne.s32.totalorder %s201, %s215
      %p217 = scmp.eq.s32.totalorder %s29, 0
      %p218 = por %p216, %p217
      %s220 = sadd.s32 %s219, 1
      %p223 = scmp.eq.s32.totalorder %s23, 1
      %p224 = scmp.ne.s32.totalorder %s219, %s221
      %p225 = scmp.eq.s32.totalorder %s23, 0
      %p226 = por %p224, %p225
      %p227 = scmp.ne.s32.totalorder %s219, %s221
      %p228 = scmp.eq.s32.totalorder %s28, 1
      %p229 = por %p227, %p228
      %p230 = scmp.ne.s32.totalorder %s221, %s222
      %p231 = scmp.eq.s32.totalorder %s28, 0
      %p232 = por %p230, %p231
      %p233 = scmp.ne.s32.totalorder %s221, %s222
      %p234 = scmp.eq.s32.totalorder %s29, 1
      %p235 = por %p233, %p234
      %p237 = scmp.ne.s32.totalorder %s222, %s236
      %p238 = scmp.eq.s32.totalorder %s29, 0
      %p239 = por %p237, %p238
      %s241 = sadd.s32 %s240, 1
      %p244 = scmp.eq.s32.totalorder %s23, 1
      %p245 = scmp.ne.s32.totalorder %s240, %s242
      %p246 = scmp.eq.s32.totalorder %s23, 0
      %p247 = por %p245, %p246
      %p248 = scmp.ne.s32.totalorder %s240, %s242
      %p249 = scmp.eq.s32.totalorder %s28, 1
      %p250 = por %p248, %p249
      %p251 = scmp.ne.s32.totalorder %s242, %s243
      %p252 = scmp.eq.s32.totalorder %s28, 0
      %p253 = por %p251, %p252
      %p254 = scmp.ne.s32.totalorder %s242, %s243
      %p255 = scmp.eq.s32.totalorder %s29, 1
      %p256 = por %p254, %p255
      %p258 = scmp.ne.s32.totalorder %s243, %s257
      %p259 = scmp.eq.s32.totalorder %s29, 0
      %p260 = por %p258, %p259
      %s262 = sadd.s32 %s261, 1
      %p265 = scmp.eq.s32.totalorder %s23, 1
      %p266 = scmp.ne.s32.totalorder %s261, %s263
      %p267 = scmp.eq.s32.totalorder %s23, 0
      %p268 = por %p266, %p267
      %p269 = scmp.ne.s32.totalorder %s261, %s263
      %p270 = scmp.eq.s32.totalorder %s28, 1
      %p271 = por %p269, %p270
      %p272 = scmp.ne.s32.totalorder %s263, %s264
      %p273 = scmp.eq.s32.totalorder %s28, 0
      %p274 = por %p272, %p273
      %p275 = scmp.ne.s32.totalorder %s263, %s264
      %p276 = scmp.eq.s32.totalorder %s29, 1
      %p277 = por %p275, %p276
      %p279 = scmp.ne.s32.totalorder %s264, %s278
      %p280 = scmp.eq.s32.totalorder %s29, 0
      %p281 = por %p279, %p280
      %s283 = sadd.s32 %s282, 1
      %p286 = scmp.eq.s32.totalorder %s23, 1
      %p287 = scmp.ne.s32.totalorder %s282, %s284
      %p288 = scmp.eq.s32.totalorder %s23, 0
      %p289 = por %p287, %p288
      %p290 = scmp.ne.s32.totalorder %s282, %s284
      %p291 = scmp.eq.s32.totalorder %s28, 1
      %p292 = por %p290, %p291
      %p293 = scmp.ne.s32.totalorder %s284, %s285
      %p294 = scmp.eq.s32.totalorder %s28, 0
      %p295 = por %p293, %p294
      %p296 = scmp.ne.s32.totalorder %s284, %s285
      %p297 = scmp.eq.s32.totalorder %s29, 1
      %p298 = por %p296, %p297
      %p300 = scmp.ne.s32.totalorder %s285, %s299
      %p301 = scmp.eq.s32.totalorder %s29, 0
      %p302 = por %p300, %p301
      %s304 = sadd.s32 %s303, 1
      %p307 = scmp.eq.s32.totalorder %s23, 1
      %p308 = scmp.ne.s32.totalorder %s303, %s305
      %p309 = scmp.eq.s32.totalorder %s23, 0
      %p310 = por %p308, %p309
      %p311 = scmp.ne.s32.totalorder %s303, %s305
      %p312 = scmp.eq.s32.totalorder %s28, 1
      %p313 = por %p311, %p312
      %p314 = scmp.ne.s32.totalorder %s305, %s306
      %p315 = scmp.eq.s32.totalorder %s28, 0
      %p316 = por %p314, %p315
      %p317 = scmp.ne.s32.totalorder %s305, %s306
      %p318 = scmp.eq.s32.totalorder %s29, 1
      %p319 = por %p317, %p318
      %p321 = scmp.ne.s32.totalorder %s306, %s320
      %p322 = scmp.eq.s32.totalorder %s29, 0
      %p323 = por %p321, %p322
      %s325 = sadd.s32 %s324, 1
      %p328 = scmp.eq.s32.totalorder %s23, 1
      %p329 = scmp.ne.s32.totalorder %s324, %s326
      %p330 = scmp.eq.s32.totalorder %s23, 0
      %p331 = por %p329, %p330
      %p332 = scmp.ne.s32.totalorder %s324, %s326
      %p333 = scmp.eq.s32.totalorder %s28, 1
      %p334 = por %p332, %p333
      %p335 = scmp.ne.s32.totalorder %s326, %s327
      %p336 = scmp.eq.s32.totalorder %s28, 0
      %p337 = por %p335, %p336
      %p338 = scmp.ne.s32.totalorder %s326, %s327
      %p339 = scmp.eq.s32.totalorder %s29, 1
      %p340 = por %p338, %p339
      %p342 = scmp.ne.s32.totalorder %s327, %s341
      %p343 = scmp.eq.s32.totalorder %s29, 0
      %p344 = por %p342, %p343
      %s345 = ssub.s32 %s23, %s30
      %p346 = scmp.eq.s32.totalorder %s345, 0
      %s348 = sadd.s32 %s347, 1
      %s349 = scalar_select %p346, %s347, %s348
      %p352 = pneg %p346
      %p353 = scmp.eq.s32.totalorder %s23, 1
      %p354 = por %p352, %p353
      %p355 = scmp.ne.s32.totalorder %s347, %s350
      %p356 = scmp.eq.s32.totalorder %s23, 0
      %p357 = por %p355, %p356
      %p358 = scmp.ne.s32.totalorder %s347, %s350
      %p359 = scmp.eq.s32.totalorder %s28, 1
      %p360 = por %p358, %p359
      %p361 = scmp.ne.s32.totalorder %s350, %s351
      %p362 = scmp.eq.s32.totalorder %s28, 0
      %p363 = por %p361, %p362
      %p364 = scmp.ne.s32.totalorder %s350, %s351
      %p365 = scmp.eq.s32.totalorder %s29, 1
      %p366 = por %p364, %p365
      %p368 = scmp.ne.s32.totalorder %s351, %s367
      %p369 = scmp.eq.s32.totalorder %s29, 0
      %p370 = por %p368, %p369
      %p371 = scmp.le.s32.totalorder 1, %s23
      %p372 = scmp.lt.s32.totalorder %s23, 3
      %p373 = pnand %p371, %p372
      %p374 = pneg %p373
      // Predicated region
      $region9: #{cross_modal_attention.1} parent=5 // pred_check
        _
      $region10: #{cross_modal_attention.1} parent=5 // pred_check_branch
        %376 = sbr.rel (%p373) target = $region12
      $region11: #{cross_modal_attention.1} parent=5 // pred_region
        %s377 = ssub.s32 %s23, 1
        // Predicated region
        $region13: #{cross_modal_attention.1} parent=11 // pred_check
          %p378 = pneg %p148
        $region14: #{cross_modal_attention.1} parent=11 // pred_check_branch
          %380 = sbr.rel (%p378) target = $region16
        $region15: #{cross_modal_attention.1} parent=11 // pred_region
          _
        $region16: #{cross_modal_attention.1} parent=11 // pred_fallthru
          _
        // Predicated region
        $region17: #{cross_modal_attention.1} parent=11 // pred_check
          %p381 = pneg %p169
        $region18: #{cross_modal_attention.1} parent=11 // pred_check_branch
          %383 = sbr.rel (%p381) target = $region20
        $region19: #{cross_modal_attention.1} parent=11 // pred_region
          _
        $region20: #{cross_modal_attention.1} parent=11 // pred_fallthru
          _
        // Predicated region
        $region21: #{cross_modal_attention.1} parent=11 // pred_check
          %p384 = pneg %p190
        $region22: #{cross_modal_attention.1} parent=11 // pred_check_branch
          %386 = sbr.rel (%p384) target = $region24
        $region23: #{cross_modal_attention.1} parent=11 // pred_region
          _
        $region24: #{cross_modal_attention.1} parent=11 // pred_fallthru
          _
        // Predicated region
        $region25: #{cross_modal_attention.1} parent=11 // pred_check
          %p387 = pneg %p211
        $region26: #{cross_modal_attention.1} parent=11 // pred_check_branch
          %389 = sbr.rel (%p387) target = $region28
        $region27: #{cross_modal_attention.1} parent=11 // pred_region
          _
        $region28: #{cross_modal_attention.1} parent=11 // pred_fallthru
          _
        // Predicated region
        $region29: #{cross_modal_attention.1} parent=11 // pred_check
          %p390 = pneg %p232
        $region30: #{cross_modal_attention.1} parent=11 // pred_check_branch
          %392 = sbr.rel (%p390) target = $region32
        $region31: #{cross_modal_attention.1} parent=11 // pred_region
          _
        $region32: #{cross_modal_attention.1} parent=11 // pred_fallthru
          _
        // Predicated region
        $region33: #{cross_modal_attention.1} parent=11 // pred_check
          %p393 = pneg %p253
        $region34: #{cross_modal_attention.1} parent=11 // pred_check_branch
          %395 = sbr.rel (%p393) target = $region36
        $region35: #{cross_modal_attention.1} parent=11 // pred_region
          _
        $region36: #{cross_modal_attention.1} parent=11 // pred_fallthru
          _
        // Predicated region
        $region37: #{cross_modal_attention.1} parent=11 // pred_check
          %p396 = pneg %p274
        $region38: #{cross_modal_attention.1} parent=11 // pred_check_branch
          %398 = sbr.rel (%p396) target = $region40
        $region39: #{cross_modal_attention.1} parent=11 // pred_region
          _
        $region40: #{cross_modal_attention.1} parent=11 // pred_fallthru
          _
        // Predicated region
        $region41: #{cross_modal_attention.1} parent=11 // pred_check
          %p399 = pneg %p295
        $region42: #{cross_modal_attention.1} parent=11 // pred_check_branch
          %401 = sbr.rel (%p399) target = $region44
        $region43: #{cross_modal_attention.1} parent=11 // pred_region
          _
        $region44: #{cross_modal_attention.1} parent=11 // pred_fallthru
          _
        // Predicated region
        $region45: #{cross_modal_attention.1} parent=11 // pred_check
          %p402 = pneg %p316
        $region46: #{cross_modal_attention.1} parent=11 // pred_check_branch
          %404 = sbr.rel (%p402) target = $region48
        $region47: #{cross_modal_attention.1} parent=11 // pred_region
          _
        $region48: #{cross_modal_attention.1} parent=11 // pred_fallthru
          _
        // Predicated region
        $region49: #{cross_modal_attention.1} parent=11 // pred_check
          %p405 = pneg %p337
        $region50: #{cross_modal_attention.1} parent=11 // pred_check_branch
          %407 = sbr.rel (%p405) target = $region52
        $region51: #{cross_modal_attention.1} parent=11 // pred_region
          _
        $region52: #{cross_modal_attention.1} parent=11 // pred_fallthru
          _
      $region12: #{cross_modal_attention.1} parent=5 // pred_fallthru
        _
      %p408 = scmp.lt.s32.totalorder %s23, 2
      // Predicated region
      $region53: #{cross_modal_attention.1} parent=5 // pred_check
        %p409 = pneg %p408
      $region54: #{cross_modal_attention.1} parent=5 // pred_check_branch
        %411 = sbr.rel (%p409) target = $region56
      $region55: #{cross_modal_attention.1} parent=5 // pred_region
        // Predicated region
        $region57: #{cross_modal_attention.1} parent=55 // pred_check
          %p412 = pneg %p43
        $region58: #{cross_modal_attention.1} parent=55 // pred_check_branch
          %414 = sbr.rel (%p412) target = $region60
        $region59: #{cross_modal_attention.1} parent=55 // pred_region
          %p415 = scmp.lt.s32.totalorder %s23, 1
          %s416 = scalar_select %p415, %s23, 1
          %s417 = smul.addr %s416, 8
          %s418 = scalar_lea.vmem %s0, %s417
        $region60: #{cross_modal_attention.1} parent=55 // pred_fallthru
          _
        // Predicated region
        $region61: #{cross_modal_attention.1} parent=55 // pred_check
          %p419 = pneg %p69
        $region62: #{cross_modal_attention.1} parent=55 // pred_check_branch
          %421 = sbr.rel (%p419) target = $region64
        $region63: #{cross_modal_attention.1} parent=55 // pred_region
          %p422 = scmp.lt.s32.totalorder %s23, 1
          %s423 = scalar_select %p422, %s23, 1
          %s424 = smul.addr %s423, 2
          %s425 = smul.addr %s424, 8
          %s426 = scalar_lea.vmem %s1, %s425
        $region64: #{cross_modal_attention.1} parent=55 // pred_fallthru
          _
        // Predicated region
        $region65: #{cross_modal_attention.1} parent=55 // pred_check
          %p427 = pneg %p95
        $region66: #{cross_modal_attention.1} parent=55 // pred_check_branch
          %429 = sbr.rel (%p427) target = $region68
        $region67: #{cross_modal_attention.1} parent=55 // pred_region
          %p430 = scmp.lt.s32.totalorder %s23, 1
          %s431 = scalar_select %p430, %s23, 1
          %s432 = smul.addr %s431, 2
          %s433 = smul.addr %s432, 8
          %s434 = scalar_lea.vmem %s2, %s433
        $region68: #{cross_modal_attention.1} parent=55 // pred_fallthru
          _
        // Predicated region
        $region69: #{cross_modal_attention.1} parent=55 // pred_check
          %p435 = pneg %p121
        $region70: #{cross_modal_attention.1} parent=55 // pred_check_branch
          %437 = sbr.rel (%p435) target = $region72
        $region71: #{cross_modal_attention.1} parent=55 // pred_region
          %p438 = scmp.lt.s32.totalorder %s23, 1
          %s439 = scalar_select %p438, %s23, 1
          %s440 = scalar_lea.vmem %s3, %s439
        $region72: #{cross_modal_attention.1} parent=55 // pred_fallthru
          _
      $region56: #{cross_modal_attention.1} parent=5 // pred_fallthru
        _
      %p441 = scmp.le.s32.totalorder 1, %s23
      %p442 = scmp.lt.s32.totalorder %s23, 3
      %p443 = pnand %p441, %p442
      %p444 = pneg %p443
      // Predicated region
      $region73: #{cross_modal_attention.1} parent=5 // pred_check
        _
      $region74: #{cross_modal_attention.1} parent=5 // pred_check_branch
        %446 = sbr.rel (%p443) target = $region76
      $region75: #{cross_modal_attention.1} parent=5 // pred_region
        %s447 = ssub.s32 %s23, 1
        %p448 = scmp.lt.s32.totalorder %s28, 1
        %s449 = scalar_select %p448, %s28, 1
        %s450 = smul.addr %s449, 8
        %s451 = scalar_lea.vmem %s0, %s450
        %p452 = pneg %p49
        %p453 = pneg %p46
        %p454 = scmp.lt.s32.totalorder %s28, 1
        %s455 = scalar_select %p454, %s28, 1
        %s456 = smul.addr %s455, 2
        %s457 = smul.addr %s456, 8
        %s458 = scalar_lea.vmem %s1, %s457
        %p459 = pneg %p75
        %p460 = pneg %p72
        %p461 = scmp.lt.s32.totalorder %s28, 1
        %s462 = scalar_select %p461, %s28, 1
        %s463 = smul.addr %s462, 2
        %s464 = smul.addr %s463, 8
        %s465 = scalar_lea.vmem %s2, %s464
        %p466 = pneg %p101
        %p467 = pneg %p98
        %p468 = scmp.lt.s32.totalorder %s28, 1
        %s469 = scalar_select %p468, %s28, 1
        %s470 = scalar_lea.vmem %s3, %s469
        %p471 = pneg %p127
        %p472 = pneg %p124
        %p473 = pneg %p148
        %p474 = pneg %p145
        %p475 = pneg %p169
        %p476 = pneg %p166
        %p477 = pneg %p190
        %p478 = pneg %p187
        %p479 = pneg %p211
        %p480 = pneg %p208
        %p481 = pneg %p232
        %p482 = pneg %p229
        %p483 = pneg %p253
        %p484 = pneg %p250
        %p485 = pneg %p274
        %p486 = pneg %p271
        %p487 = pneg %p295
        %p488 = pneg %p292
        %p489 = pneg %p316
        %p490 = pneg %p313
        %p491 = pneg %p337
        %p492 = pneg %p334
        %p493 = pneg %p363
        %p494 = pneg %p360
        %s495 = sand.u32 %s350, 1
        %s496 = scalar_lea.sflag [#allocation3], %s495
        %s497 = sand.u32 %s350, 1
        %s498 = smul.addr %s497, 8
        %s499 = scalar_lea.vmem [#allocation2], %s498
        %p500 = scmp.lt.s32.totalorder %s28, 1
        %s501 = scalar_select %p500, %s28, 1
        %s502 = smul.addr %s501, 8
        %s503 = scalar_lea.vmem %s0, %s502
        %p504 = scmp.lt.s32.totalorder %s28, 1
        %s505 = scalar_select %p504, %s28, 1
        %s506 = smul.addr %s505, 2
        %s507 = smul.addr %s506, 8
        %s508 = scalar_lea.vmem %s1, %s507
        %p509 = scmp.lt.s32.totalorder %s28, 1
        %s510 = scalar_select %p509, %s28, 1
        %s511 = smul.addr %s510, 2
        %s512 = smul.addr %s511, 8
        %s513 = scalar_lea.vmem %s2, %s512
        %p514 = scmp.lt.s32.totalorder %s28, 1
        %s515 = scalar_select %p514, %s28, 1
        %s516 = scalar_lea.vmem %s3, %s515
        %v518 = vld [vmem:[%s503] sm:$0xff]
        %v519 = vld [vmem:[%s508] sm:$0xff]
        %v520 = vld [vmem:[%s508 + $0x8] sm:$0xff]
        %v521 = vld [vmem:[%s513] sm:$0xff]
        %v522 = vld [vmem:[%s513 + $0x8] sm:$0xff]
        %v523 = vld [vmem:[%s516] sm:$0x1]
        %v524 = vpack.c.bf16 %v518, %v518
        %v525 = vld [vmem:[%s4] sm:$0xf]
        %v526 = vld [vmem:[%s4 + $0x4] sm:$0xf]
        %v527 = vld [vmem:[%s4 + $0x8] sm:$0xf]
        %v528 = vld [vmem:[%s4 + $0xc] sm:$0xf]
        %v529 = vld [vmem:[%s4 + $0x10] sm:$0xf]
        %v530 = vld [vmem:[%s4 + $0x14] sm:$0xf]
        %v531 = vld [vmem:[%s4 + $0x18] sm:$0xf]
        %v532 = vld [vmem:[%s4 + $0x1c] sm:$0xf]
        %v533 = vld [vmem:[%s4 + $0x20] sm:$0xf]
        %v534 = vld [vmem:[%s4 + $0x24] sm:$0xf]
        %v535 = vld [vmem:[%s4 + $0x28] sm:$0xf]
        %v536 = vld [vmem:[%s4 + $0x2c] sm:$0xf]
        %v537 = vld [vmem:[%s4 + $0x30] sm:$0xf]
        %v538 = vld [vmem:[%s4 + $0x34] sm:$0xf]
        %v539 = vld [vmem:[%s4 + $0x38] sm:$0xf]
        %v540 = vld [vmem:[%s4 + $0x3c] sm:$0xf]
        %v541 = vld [vmem:[%s5] sm:$0x1]
        %v543 = vlaneseq
        %v544 = vshrl.u32 %v543, 7
        %v545 = vsub.s32 0, %v544
        %v546 = vrot.slane %v541, %v545
        %v564 = vunpack.c.l.b16 %v525
        %v565 = vunpack.c.l.b16 %v526
        %v566 = vunpack.c.l.b16 %v527
        %v567 = vunpack.c.l.b16 %v528
        %v568 = vunpack.c.l.b16 %v529
        %v569 = vunpack.c.l.b16 %v530
        %v570 = vunpack.c.l.b16 %v531
        %v571 = vunpack.c.l.b16 %v532
        %v572 = vunpack.c.l.b16 %v533
        %v573 = vunpack.c.l.b16 %v534
        %v574 = vunpack.c.l.b16 %v535
        %v575 = vunpack.c.l.b16 %v536
        %v576 = vunpack.c.l.b16 %v537
        %v577 = vunpack.c.l.b16 %v538
        %v578 = vunpack.c.l.b16 %v539
        %v579 = vunpack.c.l.b16 %v540
        %v580 = vpack.c.b16 %v565, %v564
        %v581 = vpack.c.b16 %v567, %v566
        %v582 = vpack.c.b16 %v569, %v568
        %v583 = vpack.c.b16 %v571, %v570
        %v584 = vpack.c.b16 %v573, %v572
        %v585 = vpack.c.b16 %v575, %v574
        %v586 = vpack.c.b16 %v577, %v576
        %v587 = vpack.c.b16 %v579, %v578
        %596 = vmatprep.subr.bf16.mxu0 0
        %597 = vmatpush1.bf16.msra.mxu0 %v580
        %598 = vmatprep.subr.bf16.mxu0 0
        %599 = vmatpush1.bf16.msra.mxu0 %v581
        %600 = vmatprep.subr.bf16.mxu0 0
        %601 = vmatpush1.bf16.msra.mxu0 %v582
        %602 = vmatprep.subr.bf16.mxu0 0
        %603 = vmatpush1.bf16.msra.mxu0 %v583
        %604 = vmatprep.subr.bf16.mxu0 0
        %605 = vmatpush1.bf16.msra.mxu0 %v584
        %606 = vmatprep.subr.bf16.mxu0 0
        %607 = vmatpush1.bf16.msra.mxu0 %v585
        %608 = vmatprep.subr.bf16.mxu0 0
        %609 = vmatpush1.bf16.msra.mxu0 %v586
        %610 = vmatprep.subr.bf16.mxu0 0
        %611 = vmatpush1.bf16.msra.mxu0 %v587
        %612 = vmatprep.subr.bf16.mxu0 0
        %613 = vmatpush1.bf16.msra.mxu0 0
        %614 = vmatprep.subr.bf16.mxu0 0
        %615 = vmatpush1.bf16.msra.mxu0 0
        %616 = vmatprep.subr.bf16.mxu0 0
        %617 = vmatpush1.bf16.msra.mxu0 0
        %618 = vmatprep.subr.bf16.mxu0 0
        %619 = vmatpush1.bf16.msra.mxu0 0
        %620 = vmatprep.subr.bf16.mxu0 0
        %621 = vmatpush1.bf16.msra.mxu0 0
        %622 = vmatprep.subr.bf16.mxu0 0
        %623 = vmatpush1.bf16.msra.mxu0 0
        %624 = vmatprep.subr.bf16.mxu0 0
        %625 = vmatpush1.bf16.msra.mxu0 0
        %626 = vmatprep.subr.bf16.mxu0 0
        %627 = vmatpush1.bf16.msra.mxu0 0
        %628 = vmatprep.mubr.bf16.mxu0 0
        %629 = vmatmul.mubr.bf16.gmra.mrb[0].mxu0 %v524
        %v630 = vpop.f32.mrb[0].mxu0
        %v631 = vadd.f32 %v546, %v630
        %v632 = vpop.f32.mrb[0].mxu0
        %v633 = vpop.f32.mrb[0].mxu0
        %v634 = vpop.f32.mrb[0].mxu0
        %635 = vdwg.mxu0
        %v636 = vpack.c.bf16 %v520, %v519
        %v637 = vld [vmem:[%s6] sm:$0xf]
        %v638 = vld [vmem:[%s6 + $0x4] sm:$0xf]
        %v639 = vld [vmem:[%s6 + $0x8] sm:$0xf]
        %v640 = vld [vmem:[%s6 + $0xc] sm:$0xf]
        %v641 = vld [vmem:[%s6 + $0x10] sm:$0xf]
        %v642 = vld [vmem:[%s6 + $0x14] sm:$0xf]
        %v643 = vld [vmem:[%s6 + $0x18] sm:$0xf]
        %v644 = vld [vmem:[%s6 + $0x1c] sm:$0xf]
        %v645 = vld [vmem:[%s6 + $0x20] sm:$0xf]
        %v646 = vld [vmem:[%s6 + $0x24] sm:$0xf]
        %v647 = vld [vmem:[%s6 + $0x28] sm:$0xf]
        %v648 = vld [vmem:[%s6 + $0x2c] sm:$0xf]
        %v649 = vld [vmem:[%s6 + $0x30] sm:$0xf]
        %v650 = vld [vmem:[%s6 + $0x34] sm:$0xf]
        %v651 = vld [vmem:[%s6 + $0x38] sm:$0xf]
        %v652 = vld [vmem:[%s6 + $0x3c] sm:$0xf]
        %v653 = vld [vmem:[%s7] sm:$0x1]
        %v655 = vlaneseq
        %v656 = vshrl.u32 %v655, 7
        %v657 = vsub.s32 0, %v656
        %v658 = vrot.slane %v653, %v657
        %v676 = vunpack.c.l.b16 %v637
        %v677 = vunpack.c.l.b16 %v638
        %v678 = vunpack.c.l.b16 %v639
        %v679 = vunpack.c.l.b16 %v640
        %v680 = vunpack.c.l.b16 %v641
        %v681 = vunpack.c.l.b16 %v642
        %v682 = vunpack.c.l.b16 %v643
        %v683 = vunpack.c.l.b16 %v644
        %v684 = vunpack.c.l.b16 %v645
        %v685 = vunpack.c.l.b16 %v646
        %v686 = vunpack.c.l.b16 %v647
        %v687 = vunpack.c.l.b16 %v648
        %v688 = vunpack.c.l.b16 %v649
        %v689 = vunpack.c.l.b16 %v650
        %v690 = vunpack.c.l.b16 %v651
        %v691 = vunpack.c.l.b16 %v652
        %v692 = vpack.c.b16 %v677, %v676
        %v693 = vpack.c.b16 %v679, %v678
        %v694 = vpack.c.b16 %v681, %v680
        %v695 = vpack.c.b16 %v683, %v682
        %v696 = vpack.c.b16 %v685, %v684
        %v697 = vpack.c.b16 %v687, %v686
        %v698 = vpack.c.b16 %v689, %v688
        %v699 = vpack.c.b16 %v691, %v690
        %708 = vmatprep.subr.bf16.mxu0 0
        %709 = vmatpush1.bf16.msra.mxu0 %v692
        %710 = vmatprep.subr.bf16.mxu0 0
        %711 = vmatpush1.bf16.msra.mxu0 %v693
        %712 = vmatprep.subr.bf16.mxu0 0
        %713 = vmatpush1.bf16.msra.mxu0 %v694
        %714 = vmatprep.subr.bf16.mxu0 0
        %715 = vmatpush1.bf16.msra.mxu0 %v695
        %716 = vmatprep.subr.bf16.mxu0 0
        %717 = vmatpush1.bf16.msra.mxu0 %v696
        %718 = vmatprep.subr.bf16.mxu0 0
        %719 = vmatpush1.bf16.msra.mxu0 %v697
        %720 = vmatprep.subr.bf16.mxu0 0
        %721 = vmatpush1.bf16.msra.mxu0 %v698
        %722 = vmatprep.subr.bf16.mxu0 0
        %723 = vmatpush1.bf16.msra.mxu0 %v699
        %724 = vmatprep.subr.bf16.mxu0 0
        %725 = vmatpush1.bf16.msra.mxu0 0
        %726 = vmatprep.subr.bf16.mxu0 0
        %727 = vmatpush1.bf16.msra.mxu0 0
        %728 = vmatprep.subr.bf16.mxu0 0
        %729 = vmatpush1.bf16.msra.mxu0 0
        %730 = vmatprep.subr.bf16.mxu0 0
        %731 = vmatpush1.bf16.msra.mxu0 0
        %732 = vmatprep.subr.bf16.mxu0 0
        %733 = vmatpush1.bf16.msra.mxu0 0
        %734 = vmatprep.subr.bf16.mxu0 0
        %735 = vmatpush1.bf16.msra.mxu0 0
        %736 = vmatprep.subr.bf16.mxu0 0
        %737 = vmatpush1.bf16.msra.mxu0 0
        %738 = vmatprep.subr.bf16.mxu0 0
        %739 = vmatpush1.bf16.msra.mxu0 0
        %740 = vmatprep.mubr.bf16.mxu0 0
        %741 = vmatmul.mubr.bf16.gmra.mrb[0].mxu0 %v636
        %v742 = vpop.f32.mrb[0].mxu0
        %v743 = vadd.f32 %v658, %v742
        %v744 = vpop.f32.mrb[0].mxu0
        %v745 = vpop.f32.mrb[0].mxu0
        %v746 = vadd.f32 %v658, %v745
        %v747 = vpop.f32.mrb[0].mxu0
        %748 = vdwg.mxu0
        %v749 = vpack.c.bf16 %v522, %v521
        %v750 = vld [vmem:[%s8] sm:$0xf]
        %v751 = vld [vmem:[%s8 + $0x4] sm:$0xf]
        %v752 = vld [vmem:[%s8 + $0x8] sm:$0xf]
        %v753 = vld [vmem:[%s8 + $0xc] sm:$0xf]
        %v754 = vld [vmem:[%s8 + $0x10] sm:$0xf]
        %v755 = vld [vmem:[%s8 + $0x14] sm:$0xf]
        %v756 = vld [vmem:[%s8 + $0x18] sm:$0xf]
        %v757 = vld [vmem:[%s8 + $0x1c] sm:$0xf]
        %v758 = vld [vmem:[%s8 + $0x20] sm:$0xf]
        %v759 = vld [vmem:[%s8 + $0x24] sm:$0xf]
        %v760 = vld [vmem:[%s8 + $0x28] sm:$0xf]
        %v761 = vld [vmem:[%s8 + $0x2c] sm:$0xf]
        %v762 = vld [vmem:[%s8 + $0x30] sm:$0xf]
        %v763 = vld [vmem:[%s8 + $0x34] sm:$0xf]
        %v764 = vld [vmem:[%s8 + $0x38] sm:$0xf]
        %v765 = vld [vmem:[%s8 + $0x3c] sm:$0xf]
        %v766 = vld [vmem:[%s9] sm:$0x1]
        %v768 = vlaneseq
        %v769 = vshrl.u32 %v768, 7
        %v770 = vsub.s32 0, %v769
        %v771 = vrot.slane %v766, %v770
        %v789 = vunpack.c.l.b16 %v750
        %v790 = vunpack.c.l.b16 %v751
        %v791 = vunpack.c.l.b16 %v752
        %v792 = vunpack.c.l.b16 %v753
        %v793 = vunpack.c.l.b16 %v754
        %v794 = vunpack.c.l.b16 %v755
        %v795 = vunpack.c.l.b16 %v756
        %v796 = vunpack.c.l.b16 %v757
        %v797 = vunpack.c.l.b16 %v758
        %v798 = vunpack.c.l.b16 %v759
        %v799 = vunpack.c.l.b16 %v760
        %v800 = vunpack.c.l.b16 %v761
        %v801 = vunpack.c.l.b16 %v762
        %v802 = vunpack.c.l.b16 %v763
        %v803 = vunpack.c.l.b16 %v764
        %v804 = vunpack.c.l.b16 %v765
        %v805 = vpack.c.b16 %v790, %v789
        %v806 = vpack.c.b16 %v792, %v791
        %v807 = vpack.c.b16 %v794, %v793
        %v808 = vpack.c.b16 %v796, %v795
        %v809 = vpack.c.b16 %v798, %v797
        %v810 = vpack.c.b16 %v800, %v799
        %v811 = vpack.c.b16 %v802, %v801
        %v812 = vpack.c.b16 %v804, %v803
        %821 = vmatprep.subr.bf16.mxu0 0
        %822 = vmatpush1.bf16.msra.mxu0 %v805
        %823 = vmatprep.subr.bf16.mxu0 0
        %824 = vmatpush1.bf16.msra.mxu0 %v806
        %825 = vmatprep.subr.bf16.mxu0 0
        %826 = vmatpush1.bf16.msra.mxu0 %v807
        %827 = vmatprep.subr.bf16.mxu0 0
        %828 = vmatpush1.bf16.msra.mxu0 %v808
        %829 = vmatprep.subr.bf16.mxu0 0
        %830 = vmatpush1.bf16.msra.mxu0 %v809
        %831 = vmatprep.subr.bf16.mxu0 0
        %832 = vmatpush1.bf16.msra.mxu0 %v810
        %833 = vmatprep.subr.bf16.mxu0 0
        %834 = vmatpush1.bf16.msra.mxu0 %v811
        %835 = vmatprep.subr.bf16.mxu0 0
        %836 = vmatpush1.bf16.msra.mxu0 %v812
        %837 = vmatprep.subr.bf16.mxu0 0
        %838 = vmatpush1.bf16.msra.mxu0 0
        %839 = vmatprep.subr.bf16.mxu0 0
        %840 = vmatpush1.bf16.msra.mxu0 0
        %841 = vmatprep.subr.bf16.mxu0 0
        %842 = vmatpush1.bf16.msra.mxu0 0
        %843 = vmatprep.subr.bf16.mxu0 0
        %844 = vmatpush1.bf16.msra.mxu0 0
        %845 = vmatprep.subr.bf16.mxu0 0
        %846 = vmatpush1.bf16.msra.mxu0 0
        %847 = vmatprep.subr.bf16.mxu0 0
        %848 = vmatpush1.bf16.msra.mxu0 0
        %849 = vmatprep.subr.bf16.mxu0 0
        %850 = vmatpush1.bf16.msra.mxu0 0
        %851 = vmatprep.subr.bf16.mxu0 0
        %852 = vmatpush1.bf16.msra.mxu0 0
        %853 = vmatprep.mubr.bf16.mxu0 0
        %854 = vmatmul.mubr.bf16.gmra.mrb[0].mxu0 %v749
        %v855 = vpop.f32.mrb[0].mxu0
        %v856 = vadd.f32 %v771, %v855
        %v857 = vpop.f32.mrb[0].mxu0
        %v858 = vpop.f32.mrb[0].mxu0
        %v859 = vadd.f32 %v771, %v858
        %v860 = vpop.f32.mrb[0].mxu0
        %861 = vdwg.mxu0
        %vm862 = vcmask 130048
        %v864 = vsel %vm862, %v631, 0
        %v867 = vsel %vm862, %v743, 0
        %v870 = vsel %vm862, %v746, 0
        %872 = vmatprep.subr.mxu0 0.0
        %873 = vmatpush1.xpose.msra.mxu0 %v867
        %874 = vmatprep.subr.mxu0 0.0
        %875 = vmatpush1.xpose.msra.mxu0 %v870
        %876 = vmatprep.subr.mxu0 0.0
        %877 = vmatpush1.xpose.msra.mxu0 0.0
        %878 = vmatprep.subr.mxu0 0.0
        %879 = vmatpush1.xpose.msra.mxu0 0.0
        %880 = vmatprep.subr.mxu0 0.0
        %881 = vmatpush1.xpose.msra.mxu0 0.0
        %882 = vmatprep.subr.mxu0 0.0
        %883 = vmatpush1.xpose.msra.mxu0 0.0
        %884 = vmatprep.subr.mxu0 0.0
        %885 = vmatpush1.xpose.msra.mxu0 0.0
        %886 = vmatprep.subr.mxu0 0.0
        %887 = vmatpush1.xpose.msra.mxu0 0.0
        %888 = vmatprep.subr.mxu0 0.0
        %889 = vmatpush1.xpose.msra.mxu0 0.0
        %890 = vmatprep.subr.mxu0 0.0
        %891 = vmatpush1.xpose.msra.mxu0 0.0
        %892 = vmatprep.subr.mxu0 0.0
        %893 = vmatpush1.xpose.msra.mxu0 0.0
        %894 = vmatprep.subr.mxu0 0.0
        %895 = vmatpush1.xpose.msra.mxu0 0.0
        %896 = vmatprep.subr.mxu0 0.0
        %897 = vmatpush1.xpose.msra.mxu0 0.0
        %898 = vmatprep.subr.mxu0 0.0
        %899 = vmatpush1.xpose.msra.mxu0 0.0
        %900 = vmatprep.subr.mxu0 0.0
        %901 = vmatpush1.xpose.msra.mxu0 0.0
        %902 = vmatprep.subr.mxu0 0.0
        %903 = vmatpush1.xpose.msra.mxu0 0.0
        %904 = vmatprep.subr.mxu0 0.0
        %905 = vmatpush1.xpose.msra.mxu0 0.0
        %906 = vmatprep.subr.mxu0 0.0
        %907 = vmatpush1.xpose.msra.mxu0 0.0
        %908 = vmatprep.subr.mxu0 0.0
        %909 = vmatpush1.xpose.msra.mxu0 0.0
        %910 = vmatprep.subr.mxu0 0.0
        %911 = vmatpush1.xpose.msra.mxu0 0.0
        %912 = vmatprep.subr.mxu0 0.0
        %913 = vmatpush1.xpose.msra.mxu0 0.0
        %914 = vmatprep.subr.mxu0 0.0
        %915 = vmatpush1.xpose.msra.mxu0 0.0
        %916 = vmatprep.subr.mxu0 0.0
        %917 = vmatpush1.xpose.msra.mxu0 0.0
        %918 = vmatprep.subr.mxu0 0.0
        %919 = vmatpush1.xpose.msra.mxu0 0.0
        %920 = vmatprep.subr.mxu0 0.0
        %921 = vmatpush1.xpose.msra.mxu0 0.0
        %922 = vmatprep.subr.mxu0 0.0
        %923 = vmatpush1.xpose.msra.mxu0 0.0
        %924 = vmatprep.subr.mxu0 0.0
        %925 = vmatpush1.xpose.msra.mxu0 0.0
        %926 = vmatprep.subr.mxu0 0.0
        %927 = vmatpush1.xpose.msra.mxu0 0.0
        %928 = vmatprep.subr.mxu0 0.0
        %929 = vmatpush1.xpose.msra.mxu0 0.0
        %930 = vmatprep.subr.mxu0 0.0
        %931 = vmatpush1.xpose.msra.mxu0 0.0
        %932 = vmatprep.subr.mxu0 0.0
        %933 = vmatpush1.xpose.msra.mxu0 0.0
        %934 = vmatprep.subr.mxu0 0.0
        %935 = vmatpush1.xpose.msra.mxu0 0.0
        %936 = vmatprep.mubr.f32.mxu0 0.0
        %937 = vmatmul.mubr.f32.gmra.mrb[0].mxu0 %v864
        %v938 = vpop.f32.mrb[0].mxu0
        %v939 = vadd.f32 0.0, %v938
        %v940 = vpop.f32.mrb[0].mxu0
        %941 = vdwg.mxu0
        %v942 = vmul.f32 %v939, 0.25
        %v944 = vlaneseq
        %v945 = vshrl.u32 %v944, 7
        %v946 = vsub.s32 0, %v945
        %v947 = vrot.slane %v523, %v946
        %v949 = vadd.f32 %v942, %v947
        %v950 = vsel %vm862, %v949, -inf
        %951 = vmax.xlane.f32.xlu0 %v950
        %v952 = vpop.xlane.xlu0 %951
        %v953 = vsub.f32 %v949, %v952
        %v954 = vmul.f32 %v953, 1.442695
        %v955 = vpow.pop %v954
        %v956 = vsel %vm862, %v955, 0.0
        %957 = vadd.xlane.f32.xlu0 %v956
        %v958 = vpop.xlane.xlu0 %957
        %v959 = vrcp.pop %v958
        %v960 = vmul.f32 %v955, %v959
        %v962 = vsel %vm862, %v960, 0
        %964 = vmatprep.subr.mxu0 0.0
        %965 = vmatpush1.msra.mxu0 %v856
        %966 = vmatprep.subr.mxu0 0.0
        %967 = vmatpush1.msra.mxu0 %v859
        %968 = vmatprep.subr.mxu0 0.0
        %969 = vmatpush1.msra.mxu0 0.0
        %970 = vmatprep.subr.mxu0 0.0
        %971 = vmatpush1.msra.mxu0 0.0
        %972 = vmatprep.subr.mxu0 0.0
        %973 = vmatpush1.msra.mxu0 0.0
        %974 = vmatprep.subr.mxu0 0.0
        %975 = vmatpush1.msra.mxu0 0.0
        %976 = vmatprep.subr.mxu0 0.0
        %977 = vmatpush1.msra.mxu0 0.0
        %978 = vmatprep.subr.mxu0 0.0
        %979 = vmatpush1.msra.mxu0 0.0
        %980 = vmatprep.subr.mxu0 0.0
        %981 = vmatpush1.msra.mxu0 0.0
        %982 = vmatprep.subr.mxu0 0.0
        %983 = vmatpush1.msra.mxu0 0.0
        %984 = vmatprep.subr.mxu0 0.0
        %985 = vmatpush1.msra.mxu0 0.0
        %986 = vmatprep.subr.mxu0 0.0
        %987 = vmatpush1.msra.mxu0 0.0
        %988 = vmatprep.subr.mxu0 0.0
        %989 = vmatpush1.msra.mxu0 0.0
        %990 = vmatprep.subr.mxu0 0.0
        %991 = vmatpush1.msra.mxu0 0.0
        %992 = vmatprep.subr.mxu0 0.0
        %993 = vmatpush1.msra.mxu0 0.0
        %994 = vmatprep.subr.mxu0 0.0
        %995 = vmatpush1.msra.mxu0 0.0
        %996 = vmatprep.subr.mxu0 0.0
        %997 = vmatpush1.msra.mxu0 0.0
        %998 = vmatprep.subr.mxu0 0.0
        %999 = vmatpush1.msra.mxu0 0.0
        %1000 = vmatprep.subr.mxu0 0.0
        %1001 = vmatpush1.msra.mxu0 0.0
        %1002 = vmatprep.subr.mxu0 0.0
        %1003 = vmatpush1.msra.mxu0 0.0
        %1004 = vmatprep.subr.mxu0 0.0
        %1005 = vmatpush1.msra.mxu0 0.0
        %1006 = vmatprep.subr.mxu0 0.0
        %1007 = vmatpush1.msra.mxu0 0.0
        %1008 = vmatprep.subr.mxu0 0.0
        %1009 = vmatpush1.msra.mxu0 0.0
        %1010 = vmatprep.subr.mxu0 0.0
        %1011 = vmatpush1.msra.mxu0 0.0
        %1012 = vmatprep.subr.mxu0 0.0
        %1013 = vmatpush1.msra.mxu0 0.0
        %1014 = vmatprep.subr.mxu0 0.0
        %1015 = vmatpush1.msra.mxu0 0.0
        %1016 = vmatprep.subr.mxu0 0.0
        %1017 = vmatpush1.msra.mxu0 0.0
        %1018 = vmatprep.subr.mxu0 0.0
        %1019 = vmatpush1.msra.mxu0 0.0
        %1020 = vmatprep.subr.mxu0 0.0
        %1021 = vmatpush1.msra.mxu0 0.0
        %1022 = vmatprep.subr.mxu0 0.0
        %1023 = vmatpush1.msra.mxu0 0.0
        %1024 = vmatprep.subr.mxu0 0.0
        %1025 = vmatpush1.msra.mxu0 0.0
        %1026 = vmatprep.subr.mxu0 0.0
        %1027 = vmatpush1.msra.mxu0 0.0
        %1028 = vmatprep.mubr.f32.mxu0 0.0
        %1029 = vmatmul.mubr.f32.gmra.mrb[0].mxu0 %v962
        %v1030 = vpop.f32.mrb[0].mxu0
        %v1031 = vadd.f32 0.0, %v1030
        %v1032 = vpop.f32.mrb[0].mxu0
        %1033 = vdwg.mxu0
        %1034 = vrot.lane.b32.xlu0 %v631, 112
        %v1035 = vpop.permute.xlu0 %1034
        %1036 = vrot.lane.b32.xlu0 %v743, 112
        %v1037 = vpop.permute.xlu0 %1036
        %1038 = vrot.lane.b32.xlu0 %v746, 112
        %v1039 = vpop.permute.xlu0 %1038
        %v1040 = vsel %vm862, %v1035, 0
        %v1042 = vsel %vm862, %v1037, 0
        %v1044 = vsel %vm862, %v1039, 0
        %1046 = vmatprep.subr.mxu0 0.0
        %1047 = vmatpush1.xpose.msra.mxu0 %v1042
        %1048 = vmatprep.subr.mxu0 0.0
        %1049 = vmatpush1.xpose.msra.mxu0 %v1044
        %1050 = vmatprep.subr.mxu0 0.0
        %1051 = vmatpush1.xpose.msra.mxu0 0.0
        %1052 = vmatprep.subr.mxu0 0.0
        %1053 = vmatpush1.xpose.msra.mxu0 0.0
        %1054 = vmatprep.subr.mxu0 0.0
        %1055 = vmatpush1.xpose.msra.mxu0 0.0
        %1056 = vmatprep.subr.mxu0 0.0
        %1057 = vmatpush1.xpose.msra.mxu0 0.0
        %1058 = vmatprep.subr.mxu0 0.0
        %1059 = vmatpush1.xpose.msra.mxu0 0.0
        %1060 = vmatprep.subr.mxu0 0.0
        %1061 = vmatpush1.xpose.msra.mxu0 0.0
        %1062 = vmatprep.subr.mxu0 0.0
        %1063 = vmatpush1.xpose.msra.mxu0 0.0
        %1064 = vmatprep.subr.mxu0 0.0
        %1065 = vmatpush1.xpose.msra.mxu0 0.0
        %1066 = vmatprep.subr.mxu0 0.0
        %1067 = vmatpush1.xpose.msra.mxu0 0.0
        %1068 = vmatprep.subr.mxu0 0.0
        %1069 = vmatpush1.xpose.msra.mxu0 0.0
        %1070 = vmatprep.subr.mxu0 0.0
        %1071 = vmatpush1.xpose.msra.mxu0 0.0
        %1072 = vmatprep.subr.mxu0 0.0
        %1073 = vmatpush1.xpose.msra.mxu0 0.0
        %1074 = vmatprep.subr.mxu0 0.0
        %1075 = vmatpush1.xpose.msra.mxu0 0.0
        %1076 = vmatprep.subr.mxu0 0.0
        %1077 = vmatpush1.xpose.msra.mxu0 0.0
        %1078 = vmatprep.subr.mxu0 0.0
        %1079 = vmatpush1.xpose.msra.mxu0 0.0
        %1080 = vmatprep.subr.mxu0 0.0
        %1081 = vmatpush1.xpose.msra.mxu0 0.0
        %1082 = vmatprep.subr.mxu0 0.0
        %1083 = vmatpush1.xpose.msra.mxu0 0.0
        %1084 = vmatprep.subr.mxu0 0.0
        %1085 = vmatpush1.xpose.msra.mxu0 0.0
        %1086 = vmatprep.subr.mxu0 0.0
        %1087 = vmatpush1.xpose.msra.mxu0 0.0
        %1088 = vmatprep.subr.mxu0 0.0
        %1089 = vmatpush1.xpose.msra.mxu0 0.0
        %1090 = vmatprep.subr.mxu0 0.0
        %1091 = vmatpush1.xpose.msra.mxu0 0.0
        %1092 = vmatprep.subr.mxu0 0.0
        %1093 = vmatpush1.xpose.msra.mxu0 0.0
        %1094 = vmatprep.subr.mxu0 0.0
        %1095 = vmatpush1.xpose.msra.mxu0 0.0
        %1096 = vmatprep.subr.mxu0 0.0
        %1097 = vmatpush1.xpose.msra.mxu0 0.0
        %1098 = vmatprep.subr.mxu0 0.0
        %1099 = vmatpush1.xpose.msra.mxu0 0.0
        %1100 = vmatprep.subr.mxu0 0.0
        %1101 = vmatpush1.xpose.msra.mxu0 0.0
        %1102 = vmatprep.subr.mxu0 0.0
        %1103 = vmatpush1.xpose.msra.mxu0 0.0
        %1104 = vmatprep.subr.mxu0 0.0
        %1105 = vmatpush1.xpose.msra.mxu0 0.0
        %1106 = vmatprep.subr.mxu0 0.0
        %1107 = vmatpush1.xpose.msra.mxu0 0.0
        %1108 = vmatprep.subr.mxu0 0.0
        %1109 = vmatpush1.xpose.msra.mxu0 0.0
        %1110 = vmatprep.mubr.f32.mxu0 0.0
        %1111 = vmatmul.mubr.f32.gmra.mrb[0].mxu0 %v1040
        %v1112 = vpop.f32.mrb[0].mxu0
        %v1113 = vadd.f32 0.0, %v1112
        %v1114 = vpop.f32.mrb[0].mxu0
        %1115 = vdwg.mxu0
        %v1116 = vmul.f32 %v1113, 0.25
        %v1117 = vadd.f32 %v1116, %v947
        %v1118 = vsel %vm862, %v1117, -inf
        %1119 = vmax.xlane.f32.xlu0 %v1118
        %v1120 = vpop.xlane.xlu0 %1119
        %v1121 = vsub.f32 %v1117, %v1120
        %v1122 = vmul.f32 %v1121, 1.442695
        %v1123 = vpow.pop %v1122
        %v1124 = vsel %vm862, %v1123, 0.0
        %1125 = vadd.xlane.f32.xlu0 %v1124
        %v1126 = vpop.xlane.xlu0 %1125
        %v1127 = vrcp.pop %v1126
        %v1128 = vmul.f32 %v1123, %v1127
        %1131 = vrot.lane.b32.xlu0 %v856, 112
        %v1132 = vpop.permute.xlu0 %1131
        %1133 = vrot.lane.b32.xlu0 %v859, 112
        %v1134 = vpop.permute.xlu0 %1133
        %v1138 = vsel %vm862, %v1128, 0
        %1140 = vmatprep.subr.mxu0 0.0
        %1141 = vmatpush1.msra.mxu0 %v1132
        %1142 = vmatprep.subr.mxu0 0.0
        %1143 = vmatpush1.msra.mxu0 %v1134
        %1144 = vmatprep.subr.mxu0 0.0
        %1145 = vmatpush1.msra.mxu0 0.0
        %1146 = vmatprep.subr.mxu0 0.0
        %1147 = vmatpush1.msra.mxu0 0.0
        %1148 = vmatprep.subr.mxu0 0.0
        %1149 = vmatpush1.msra.mxu0 0.0
        %1150 = vmatprep.subr.mxu0 0.0
        %1151 = vmatpush1.msra.mxu0 0.0
        %1152 = vmatprep.subr.mxu0 0.0
        %1153 = vmatpush1.msra.mxu0 0.0
        %1154 = vmatprep.subr.mxu0 0.0
        %1155 = vmatpush1.msra.mxu0 0.0
        %1156 = vmatprep.subr.mxu0 0.0
        %1157 = vmatpush1.msra.mxu0 0.0
        %1158 = vmatprep.subr.mxu0 0.0
        %1159 = vmatpush1.msra.mxu0 0.0
        %1160 = vmatprep.subr.mxu0 0.0
        %1161 = vmatpush1.msra.mxu0 0.0
        %1162 = vmatprep.subr.mxu0 0.0
        %1163 = vmatpush1.msra.mxu0 0.0
        %1164 = vmatprep.subr.mxu0 0.0
        %1165 = vmatpush1.msra.mxu0 0.0
        %1166 = vmatprep.subr.mxu0 0.0
        %1167 = vmatpush1.msra.mxu0 0.0
        %1168 = vmatprep.subr.mxu0 0.0
        %1169 = vmatpush1.msra.mxu0 0.0
        %1170 = vmatprep.subr.mxu0 0.0
        %1171 = vmatpush1.msra.mxu0 0.0
        %1172 = vmatprep.subr.mxu0 0.0
        %1173 = vmatpush1.msra.mxu0 0.0
        %1174 = vmatprep.subr.mxu0 0.0
        %1175 = vmatpush1.msra.mxu0 0.0
        %1176 = vmatprep.subr.mxu0 0.0
        %1177 = vmatpush1.msra.mxu0 0.0
        %1178 = vmatprep.subr.mxu0 0.0
        %1179 = vmatpush1.msra.mxu0 0.0
        %1180 = vmatprep.subr.mxu0 0.0
        %1181 = vmatpush1.msra.mxu0 0.0
        %1182 = vmatprep.subr.mxu0 0.0
        %1183 = vmatpush1.msra.mxu0 0.0
        %1184 = vmatprep.subr.mxu0 0.0
        %1185 = vmatpush1.msra.mxu0 0.0
        %1186 = vmatprep.subr.mxu0 0.0
        %1187 = vmatpush1.msra.mxu0 0.0
        %1188 = vmatprep.subr.mxu0 0.0
        %1189 = vmatpush1.msra.mxu0 0.0
        %1190 = vmatprep.subr.mxu0 0.0
        %1191 = vmatpush1.msra.mxu0 0.0
        %1192 = vmatprep.subr.mxu0 0.0
        %1193 = vmatpush1.msra.mxu0 0.0
        %1194 = vmatprep.subr.mxu0 0.0
        %1195 = vmatpush1.msra.mxu0 0.0
        %1196 = vmatprep.subr.mxu0 0.0
        %1197 = vmatpush1.msra.mxu0 0.0
        %1198 = vmatprep.subr.mxu0 0.0
        %1199 = vmatpush1.msra.mxu0 0.0
        %1200 = vmatprep.subr.mxu0 0.0
        %1201 = vmatpush1.msra.mxu0 0.0
        %1202 = vmatprep.subr.mxu0 0.0
        %1203 = vmatpush1.msra.mxu0 0.0
        %1204 = vmatprep.mubr.f32.mxu0 0.0
        %1205 = vmatmul.mubr.f32.gmra.mrb[0].mxu0 %v1138
        %v1206 = vpop.f32.mrb[0].mxu0
        %v1207 = vadd.f32 0.0, %v1206
        %v1208 = vpop.f32.mrb[0].mxu0
        %1209 = vdwg.mxu0
        %1210 = vrot.lane.b32.xlu0 %v631, 96
        %v1211 = vpop.permute.xlu0 %1210
        %1212 = vrot.lane.b32.xlu0 %v743, 96
        %v1213 = vpop.permute.xlu0 %1212
        %1214 = vrot.lane.b32.xlu0 %v746, 96
        %v1215 = vpop.permute.xlu0 %1214
        %v1216 = vsel %vm862, %v1211, 0
        %v1218 = vsel %vm862, %v1213, 0
        %v1220 = vsel %vm862, %v1215, 0
        %1222 = vmatprep.subr.mxu0 0.0
        %1223 = vmatpush1.xpose.msra.mxu0 %v1218
        %1224 = vmatprep.subr.mxu0 0.0
        %1225 = vmatpush1.xpose.msra.mxu0 %v1220
        %1226 = vmatprep.subr.mxu0 0.0
        %1227 = vmatpush1.xpose.msra.mxu0 0.0
        %1228 = vmatprep.subr.mxu0 0.0
        %1229 = vmatpush1.xpose.msra.mxu0 0.0
        %1230 = vmatprep.subr.mxu0 0.0
        %1231 = vmatpush1.xpose.msra.mxu0 0.0
        %1232 = vmatprep.subr.mxu0 0.0
        %1233 = vmatpush1.xpose.msra.mxu0 0.0
        %1234 = vmatprep.subr.mxu0 0.0
        %1235 = vmatpush1.xpose.msra.mxu0 0.0
        %1236 = vmatprep.subr.mxu0 0.0
        %1237 = vmatpush1.xpose.msra.mxu0 0.0
        %1238 = vmatprep.subr.mxu0 0.0
        %1239 = vmatpush1.xpose.msra.mxu0 0.0
        %1240 = vmatprep.subr.mxu0 0.0
        %1241 = vmatpush1.xpose.msra.mxu0 0.0
        %1242 = vmatprep.subr.mxu0 0.0
        %1243 = vmatpush1.xpose.msra.mxu0 0.0
        %1244 = vmatprep.subr.mxu0 0.0
        %1245 = vmatpush1.xpose.msra.mxu0 0.0
        %1246 = vmatprep.subr.mxu0 0.0
        %1247 = vmatpush1.xpose.msra.mxu0 0.0
        %1248 = vmatprep.subr.mxu0 0.0
        %1249 = vmatpush1.xpose.msra.mxu0 0.0
        %1250 = vmatprep.subr.mxu0 0.0
        %1251 = vmatpush1.xpose.msra.mxu0 0.0
        %1252 = vmatprep.subr.mxu0 0.0
        %1253 = vmatpush1.xpose.msra.mxu0 0.0
        %1254 = vmatprep.subr.mxu0 0.0
        %1255 = vmatpush1.xpose.msra.mxu0 0.0
        %1256 = vmatprep.subr.mxu0 0.0
        %1257 = vmatpush1.xpose.msra.mxu0 0.0
        %1258 = vmatprep.subr.mxu0 0.0
        %1259 = vmatpush1.xpose.msra.mxu0 0.0
        %1260 = vmatprep.subr.mxu0 0.0
        %1261 = vmatpush1.xpose.msra.mxu0 0.0
        %1262 = vmatprep.subr.mxu0 0.0
        %1263 = vmatpush1.xpose.msra.mxu0 0.0
        %1264 = vmatprep.subr.mxu0 0.0
        %1265 = vmatpush1.xpose.msra.mxu0 0.0
        %1266 = vmatprep.subr.mxu0 0.0
        %1267 = vmatpush1.xpose.msra.mxu0 0.0
        %1268 = vmatprep.subr.mxu0 0.0
        %1269 = vmatpush1.xpose.msra.mxu0 0.0
        %1270 = vmatprep.subr.mxu0 0.0
        %1271 = vmatpush1.xpose.msra.mxu0 0.0
        %1272 = vmatprep.subr.mxu0 0.0
        %1273 = vmatpush1.xpose.msra.mxu0 0.0
        %1274 = vmatprep.subr.mxu0 0.0
        %1275 = vmatpush1.xpose.msra.mxu0 0.0
        %1276 = vmatprep.subr.mxu0 0.0
        %1277 = vmatpush1.xpose.msra.mxu0 0.0
        %1278 = vmatprep.subr.mxu0 0.0
        %1279 = vmatpush1.xpose.msra.mxu0 0.0
        %1280 = vmatprep.subr.mxu0 0.0
        %1281 = vmatpush1.xpose.msra.mxu0 0.0
        %1282 = vmatprep.subr.mxu0 0.0
        %1283 = vmatpush1.xpose.msra.mxu0 0.0
        %1284 = vmatprep.subr.mxu0 0.0
        %1285 = vmatpush1.xpose.msra.mxu0 0.0
        %1286 = vmatprep.mubr.f32.mxu0 0.0
        %1287 = vmatmul.mubr.f32.gmra.mrb[0].mxu0 %v1216
        %v1288 = vpop.f32.mrb[0].mxu0
        %v1289 = vadd.f32 0.0, %v1288
        %v1290 = vpop.f32.mrb[0].mxu0
        %1291 = vdwg.mxu0
        %v1292 = vmul.f32 %v1289, 0.25
        %v1293 = vadd.f32 %v1292, %v947
        %v1294 = vsel %vm862, %v1293, -inf
        %1295 = vmax.xlane.f32.xlu0 %v1294
        %v1296 = vpop.xlane.xlu0 %1295
        %v1297 = vsub.f32 %v1293, %v1296
        %v1298 = vmul.f32 %v1297, 1.442695
        %v1299 = vpow.pop %v1298
        %v1300 = vsel %vm862, %v1299, 0.0
        %1301 = vadd.xlane.f32.xlu0 %v1300
        %v1302 = vpop.xlane.xlu0 %1301
        %v1303 = vrcp.pop %v1302
        %v1304 = vmul.f32 %v1299, %v1303
        %1305 = vrot.lane.b32.xlu0 %v856, 96
        %v1306 = vpop.permute.xlu0 %1305
        %1307 = vrot.lane.b32.xlu0 %v859, 96
        %v1308 = vpop.permute.xlu0 %1307
        %v1312 = vsel %vm862, %v1304, 0
        %1314 = vmatprep.subr.mxu0 0.0
        %1315 = vmatpush1.msra.mxu0 %v1306
        %1316 = vmatprep.subr.mxu0 0.0
        %1317 = vmatpush1.msra.mxu0 %v1308
        %1318 = vmatprep.subr.mxu0 0.0
        %1319 = vmatpush1.msra.mxu0 0.0
        %1320 = vmatprep.subr.mxu0 0.0
        %1321 = vmatpush1.msra.mxu0 0.0
        %1322 = vmatprep.subr.mxu0 0.0
        %1323 = vmatpush1.msra.mxu0 0.0
        %1324 = vmatprep.subr.mxu0 0.0
        %1325 = vmatpush1.msra.mxu0 0.0
        %1326 = vmatprep.subr.mxu0 0.0
        %1327 = vmatpush1.msra.mxu0 0.0
        %1328 = vmatprep.subr.mxu0 0.0
        %1329 = vmatpush1.msra.mxu0 0.0
        %1330 = vmatprep.subr.mxu0 0.0
        %1331 = vmatpush1.msra.mxu0 0.0
        %1332 = vmatprep.subr.mxu0 0.0
        %1333 = vmatpush1.msra.mxu0 0.0
        %1334 = vmatprep.subr.mxu0 0.0
        %1335 = vmatpush1.msra.mxu0 0.0
        %1336 = vmatprep.subr.mxu0 0.0
        %1337 = vmatpush1.msra.mxu0 0.0
        %1338 = vmatprep.subr.mxu0 0.0
        %1339 = vmatpush1.msra.mxu0 0.0
        %1340 = vmatprep.subr.mxu0 0.0
        %1341 = vmatpush1.msra.mxu0 0.0
        %1342 = vmatprep.subr.mxu0 0.0
        %1343 = vmatpush1.msra.mxu0 0.0
        %1344 = vmatprep.subr.mxu0 0.0
        %1345 = vmatpush1.msra.mxu0 0.0
        %1346 = vmatprep.subr.mxu0 0.0
        %1347 = vmatpush1.msra.mxu0 0.0
        %1348 = vmatprep.subr.mxu0 0.0
        %1349 = vmatpush1.msra.mxu0 0.0
        %1350 = vmatprep.subr.mxu0 0.0
        %1351 = vmatpush1.msra.mxu0 0.0
        %1352 = vmatprep.subr.mxu0 0.0
        %1353 = vmatpush1.msra.mxu0 0.0
        %1354 = vmatprep.subr.mxu0 0.0
        %1355 = vmatpush1.msra.mxu0 0.0
        %1356 = vmatprep.subr.mxu0 0.0
        %1357 = vmatpush1.msra.mxu0 0.0
        %1358 = vmatprep.subr.mxu0 0.0
        %1359 = vmatpush1.msra.mxu0 0.0
        %1360 = vmatprep.subr.mxu0 0.0
        %1361 = vmatpush1.msra.mxu0 0.0
        %1362 = vmatprep.subr.mxu0 0.0
        %1363 = vmatpush1.msra.mxu0 0.0
        %1364 = vmatprep.subr.mxu0 0.0
        %1365 = vmatpush1.msra.mxu0 0.0
        %1366 = vmatprep.subr.mxu0 0.0
        %1367 = vmatpush1.msra.mxu0 0.0
        %1368 = vmatprep.subr.mxu0 0.0
        %1369 = vmatpush1.msra.mxu0 0.0
        %1370 = vmatprep.subr.mxu0 0.0
        %1371 = vmatpush1.msra.mxu0 0.0
        %1372 = vmatprep.subr.mxu0 0.0
        %1373 = vmatpush1.msra.mxu0 0.0
        %1374 = vmatprep.subr.mxu0 0.0
        %1375 = vmatpush1.msra.mxu0 0.0
        %1376 = vmatprep.subr.mxu0 0.0
        %1377 = vmatpush1.msra.mxu0 0.0
        %1378 = vmatprep.mubr.f32.mxu0 0.0
        %1379 = vmatmul.mubr.f32.gmra.mrb[0].mxu0 %v1312
        %v1380 = vpop.f32.mrb[0].mxu0
        %v1381 = vadd.f32 0.0, %v1380
        %v1382 = vpop.f32.mrb[0].mxu0
        %1383 = vdwg.mxu0
        %1384 = vrot.lane.b32.xlu0 %v631, 80
        %v1385 = vpop.permute.xlu0 %1384
        %1386 = vrot.lane.b32.xlu0 %v743, 80
        %v1387 = vpop.permute.xlu0 %1386
        %1388 = vrot.lane.b32.xlu0 %v746, 80
        %v1389 = vpop.permute.xlu0 %1388
        %v1390 = vsel %vm862, %v1385, 0
        %v1392 = vsel %vm862, %v1387, 0
        %v1394 = vsel %vm862, %v1389, 0
        %1396 = vmatprep.subr.mxu0 0.0
        %1397 = vmatpush1.xpose.msra.mxu0 %v1392
        %1398 = vmatprep.subr.mxu0 0.0
        %1399 = vmatpush1.xpose.msra.mxu0 %v1394
        %1400 = vmatprep.subr.mxu0 0.0
        %1401 = vmatpush1.xpose.msra.mxu0 0.0
        %1402 = vmatprep.subr.mxu0 0.0
        %1403 = vmatpush1.xpose.msra.mxu0 0.0
        %1404 = vmatprep.subr.mxu0 0.0
        %1405 = vmatpush1.xpose.msra.mxu0 0.0
        %1406 = vmatprep.subr.mxu0 0.0
        %1407 = vmatpush1.xpose.msra.mxu0 0.0
        %1408 = vmatprep.subr.mxu0 0.0
        %1409 = vmatpush1.xpose.msra.mxu0 0.0
        %1410 = vmatprep.subr.mxu0 0.0
        %1411 = vmatpush1.xpose.msra.mxu0 0.0
        %1412 = vmatprep.subr.mxu0 0.0
        %1413 = vmatpush1.xpose.msra.mxu0 0.0
        %1414 = vmatprep.subr.mxu0 0.0
        %1415 = vmatpush1.xpose.msra.mxu0 0.0
        %1416 = vmatprep.subr.mxu0 0.0
        %1417 = vmatpush1.xpose.msra.mxu0 0.0
        %1418 = vmatprep.subr.mxu0 0.0
        %1419 = vmatpush1.xpose.msra.mxu0 0.0
        %1420 = vmatprep.subr.mxu0 0.0
        %1421 = vmatpush1.xpose.msra.mxu0 0.0
        %1422 = vmatprep.subr.mxu0 0.0
        %1423 = vmatpush1.xpose.msra.mxu0 0.0
        %1424 = vmatprep.subr.mxu0 0.0
        %1425 = vmatpush1.xpose.msra.mxu0 0.0
        %1426 = vmatprep.subr.mxu0 0.0
        %1427 = vmatpush1.xpose.msra.mxu0 0.0
        %1428 = vmatprep.subr.mxu0 0.0
        %1429 = vmatpush1.xpose.msra.mxu0 0.0
        %1430 = vmatprep.subr.mxu0 0.0
        %1431 = vmatpush1.xpose.msra.mxu0 0.0
        %1432 = vmatprep.subr.mxu0 0.0
        %1433 = vmatpush1.xpose.msra.mxu0 0.0
        %1434 = vmatprep.subr.mxu0 0.0
        %1435 = vmatpush1.xpose.msra.mxu0 0.0
        %1436 = vmatprep.subr.mxu0 0.0
        %1437 = vmatpush1.xpose.msra.mxu0 0.0
        %1438 = vmatprep.subr.mxu0 0.0
        %1439 = vmatpush1.xpose.msra.mxu0 0.0
        %1440 = vmatprep.subr.mxu0 0.0
        %1441 = vmatpush1.xpose.msra.mxu0 0.0
        %1442 = vmatprep.subr.mxu0 0.0
        %1443 = vmatpush1.xpose.msra.mxu0 0.0
        %1444 = vmatprep.subr.mxu0 0.0
        %1445 = vmatpush1.xpose.msra.mxu0 0.0
        %1446 = vmatprep.subr.mxu0 0.0
        %1447 = vmatpush1.xpose.msra.mxu0 0.0
        %1448 = vmatprep.subr.mxu0 0.0
        %1449 = vmatpush1.xpose.msra.mxu0 0.0
        %1450 = vmatprep.subr.mxu0 0.0
        %1451 = vmatpush1.xpose.msra.mxu0 0.0
        %1452 = vmatprep.subr.mxu0 0.0
        %1453 = vmatpush1.xpose.msra.mxu0 0.0
        %1454 = vmatprep.subr.mxu0 0.0
        %1455 = vmatpush1.xpose.msra.mxu0 0.0
        %1456 = vmatprep.subr.mxu0 0.0
        %1457 = vmatpush1.xpose.msra.mxu0 0.0
        %1458 = vmatprep.subr.mxu0 0.0
        %1459 = vmatpush1.xpose.msra.mxu0 0.0
        %1460 = vmatprep.mubr.f32.mxu0 0.0
        %1461 = vmatmul.mubr.f32.gmra.mrb[0].mxu0 %v1390
        %v1462 = vpop.f32.mrb[0].mxu0
        %v1463 = vadd.f32 0.0, %v1462
        %v1464 = vpop.f32.mrb[0].mxu0
        %1465 = vdwg.mxu0
        %v1466 = vmul.f32 %v1463, 0.25
        %v1467 = vadd.f32 %v1466, %v947
        %v1468 = vsel %vm862, %v1467, -inf
        %1469 = vmax.xlane.f32.xlu0 %v1468
        %v1470 = vpop.xlane.xlu0 %1469
        %v1471 = vsub.f32 %v1467, %v1470
        %v1472 = vmul.f32 %v1471, 1.442695
        %v1473 = vpow.pop %v1472
        %v1474 = vsel %vm862, %v1473, 0.0
        %1475 = vadd.xlane.f32.xlu0 %v1474
        %v1476 = vpop.xlane.xlu0 %1475
        %v1477 = vrcp.pop %v1476
        %v1478 = vmul.f32 %v1473, %v1477
        %1479 = vrot.lane.b32.xlu0 %v856, 80
        %v1480 = vpop.permute.xlu0 %1479
        %1481 = vrot.lane.b32.xlu0 %v859, 80
        %v1482 = vpop.permute.xlu0 %1481
        %v1486 = vsel %vm862, %v1478, 0
        %1488 = vmatprep.subr.mxu0 0.0
        %1489 = vmatpush1.msra.mxu0 %v1480
        %1490 = vmatprep.subr.mxu0 0.0
        %1491 = vmatpush1.msra.mxu0 %v1482
        %1492 = vmatprep.subr.mxu0 0.0
        %1493 = vmatpush1.msra.mxu0 0.0
        %1494 = vmatprep.subr.mxu0 0.0
        %1495 = vmatpush1.msra.mxu0 0.0
        %1496 = vmatprep.subr.mxu0 0.0
        %1497 = vmatpush1.msra.mxu0 0.0
        %1498 = vmatprep.subr.mxu0 0.0
        %1499 = vmatpush1.msra.mxu0 0.0
        %1500 = vmatprep.subr.mxu0 0.0
        %1501 = vmatpush1.msra.mxu0 0.0
        %1502 = vmatprep.subr.mxu0 0.0
        %1503 = vmatpush1.msra.mxu0 0.0
        %1504 = vmatprep.subr.mxu0 0.0
        %1505 = vmatpush1.msra.mxu0 0.0
        %1506 = vmatprep.subr.mxu0 0.0
        %1507 = vmatpush1.msra.mxu0 0.0
        %1508 = vmatprep.subr.mxu0 0.0
        %1509 = vmatpush1.msra.mxu0 0.0
        %1510 = vmatprep.subr.mxu0 0.0
        %1511 = vmatpush1.msra.mxu0 0.0
        %1512 = vmatprep.subr.mxu0 0.0
        %1513 = vmatpush1.msra.mxu0 0.0
        %1514 = vmatprep.subr.mxu0 0.0
        %1515 = vmatpush1.msra.mxu0 0.0
        %1516 = vmatprep.subr.mxu0 0.0
        %1517 = vmatpush1.msra.mxu0 0.0
        %1518 = vmatprep.subr.mxu0 0.0
        %1519 = vmatpush1.msra.mxu0 0.0
        %1520 = vmatprep.subr.mxu0 0.0
        %1521 = vmatpush1.msra.mxu0 0.0
        %1522 = vmatprep.subr.mxu0 0.0
        %1523 = vmatpush1.msra.mxu0 0.0
        %1524 = vmatprep.subr.mxu0 0.0
        %1525 = vmatpush1.msra.mxu0 0.0
        %1526 = vmatprep.subr.mxu0 0.0
        %1527 = vmatpush1.msra.mxu0 0.0
        %1528 = vmatprep.subr.mxu0 0.0
        %1529 = vmatpush1.msra.mxu0 0.0
        %1530 = vmatprep.subr.mxu0 0.0
        %1531 = vmatpush1.msra.mxu0 0.0
        %1532 = vmatprep.subr.mxu0 0.0
        %1533 = vmatpush1.msra.mxu0 0.0
        %1534 = vmatprep.subr.mxu0 0.0
        %1535 = vmatpush1.msra.mxu0 0.0
        %1536 = vmatprep.subr.mxu0 0.0
        %1537 = vmatpush1.msra.mxu0 0.0
        %1538 = vmatprep.subr.mxu0 0.0
        %1539 = vmatpush1.msra.mxu0 0.0
        %1540 = vmatprep.subr.mxu0 0.0
        %1541 = vmatpush1.msra.mxu0 0.0
        %1542 = vmatprep.subr.mxu0 0.0
        %1543 = vmatpush1.msra.mxu0 0.0
        %1544 = vmatprep.subr.mxu0 0.0
        %1545 = vmatpush1.msra.mxu0 0.0
        %1546 = vmatprep.subr.mxu0 0.0
        %1547 = vmatpush1.msra.mxu0 0.0
        %1548 = vmatprep.subr.mxu0 0.0
        %1549 = vmatpush1.msra.mxu0 0.0
        %1550 = vmatprep.subr.mxu0 0.0
        %1551 = vmatpush1.msra.mxu0 0.0
        %1552 = vmatprep.mubr.f32.mxu0 0.0
        %1553 = vmatmul.mubr.f32.gmra.mrb[0].mxu0 %v1486
        %v1554 = vpop.f32.mrb[0].mxu0
        %v1555 = vadd.f32 0.0, %v1554
        %v1556 = vpop.f32.mrb[0].mxu0
        %1557 = vdwg.mxu0
        %1558 = vrot.lane.b32.xlu0 %v631, 64
        %v1559 = vpop.permute.xlu0 %1558
        %1560 = vrot.lane.b32.xlu0 %v743, 64
        %v1561 = vpop.permute.xlu0 %1560
        %1562 = vrot.lane.b32.xlu0 %v746, 64
        %v1563 = vpop.permute.xlu0 %1562
        %v1564 = vsel %vm862, %v1559, 0
        %v1566 = vsel %vm862, %v1561, 0
        %v1568 = vsel %vm862, %v1563, 0
        %1570 = vmatprep.subr.mxu0 0.0
        %1571 = vmatpush1.xpose.msra.mxu0 %v1566
        %1572 = vmatprep.subr.mxu0 0.0
        %1573 = vmatpush1.xpose.msra.mxu0 %v1568
        %1574 = vmatprep.subr.mxu0 0.0
        %1575 = vmatpush1.xpose.msra.mxu0 0.0
        %1576 = vmatprep.subr.mxu0 0.0
        %1577 = vmatpush1.xpose.msra.mxu0 0.0
        %1578 = vmatprep.subr.mxu0 0.0
        %1579 = vmatpush1.xpose.msra.mxu0 0.0
        %1580 = vmatprep.subr.mxu0 0.0
        %1581 = vmatpush1.xpose.msra.mxu0 0.0
        %1582 = vmatprep.subr.mxu0 0.0
        %1583 = vmatpush1.xpose.msra.mxu0 0.0
        %1584 = vmatprep.subr.mxu0 0.0
        %1585 = vmatpush1.xpose.msra.mxu0 0.0
        %1586 = vmatprep.subr.mxu0 0.0
        %1587 = vmatpush1.xpose.msra.mxu0 0.0
        %1588 = vmatprep.subr.mxu0 0.0
        %1589 = vmatpush1.xpose.msra.mxu0 0.0
        %1590 = vmatprep.subr.mxu0 0.0
        %1591 = vmatpush1.xpose.msra.mxu0 0.0
        %1592 = vmatprep.subr.mxu0 0.0
        %1593 = vmatpush1.xpose.msra.mxu0 0.0
        %1594 = vmatprep.subr.mxu0 0.0
        %1595 = vmatpush1.xpose.msra.mxu0 0.0
        %1596 = vmatprep.subr.mxu0 0.0
        %1597 = vmatpush1.xpose.msra.mxu0 0.0
        %1598 = vmatprep.subr.mxu0 0.0
        %1599 = vmatpush1.xpose.msra.mxu0 0.0
        %1600 = vmatprep.subr.mxu0 0.0
        %1601 = vmatpush1.xpose.msra.mxu0 0.0
        %1602 = vmatprep.subr.mxu0 0.0
        %1603 = vmatpush1.xpose.msra.mxu0 0.0
        %1604 = vmatprep.subr.mxu0 0.0
        %1605 = vmatpush1.xpose.msra.mxu0 0.0
        %1606 = vmatprep.subr.mxu0 0.0
        %1607 = vmatpush1.xpose.msra.mxu0 0.0
        %1608 = vmatprep.subr.mxu0 0.0
        %1609 = vmatpush1.xpose.msra.mxu0 0.0
        %1610 = vmatprep.subr.mxu0 0.0
        %1611 = vmatpush1.xpose.msra.mxu0 0.0
        %1612 = vmatprep.subr.mxu0 0.0
        %1613 = vmatpush1.xpose.msra.mxu0 0.0
        %1614 = vmatprep.subr.mxu0 0.0
        %1615 = vmatpush1.xpose.msra.mxu0 0.0
        %1616 = vmatprep.subr.mxu0 0.0
        %1617 = vmatpush1.xpose.msra.mxu0 0.0
        %1618 = vmatprep.subr.mxu0 0.0
        %1619 = vmatpush1.xpose.msra.mxu0 0.0
        %1620 = vmatprep.subr.mxu0 0.0
        %1621 = vmatpush1.xpose.msra.mxu0 0.0
        %1622 = vmatprep.subr.mxu0 0.0
        %1623 = vmatpush1.xpose.msra.mxu0 0.0
        %1624 = vmatprep.subr.mxu0 0.0
        %1625 = vmatpush1.xpose.msra.mxu0 0.0
        %1626 = vmatprep.subr.mxu0 0.0
        %1627 = vmatpush1.xpose.msra.mxu0 0.0
        %1628 = vmatprep.subr.mxu0 0.0
        %1629 = vmatpush1.xpose.msra.mxu0 0.0
        %1630 = vmatprep.subr.mxu0 0.0
        %1631 = vmatpush1.xpose.msra.mxu0 0.0
        %1632 = vmatprep.subr.mxu0 0.0
        %1633 = vmatpush1.xpose.msra.mxu0 0.0
        %1634 = vmatprep.mubr.f32.mxu0 0.0
        %1635 = vmatmul.mubr.f32.gmra.mrb[0].mxu0 %v1564
        %v1636 = vpop.f32.mrb[0].mxu0
        %v1637 = vadd.f32 0.0, %v1636
        %v1638 = vpop.f32.mrb[0].mxu0
        %1639 = vdwg.mxu0
        %v1640 = vmul.f32 %v1637, 0.25
        %v1641 = vadd.f32 %v1640, %v947
        %v1642 = vsel %vm862, %v1641, -inf
        %1643 = vmax.xlane.f32.xlu0 %v1642
        %v1644 = vpop.xlane.xlu0 %1643
        %v1645 = vsub.f32 %v1641, %v1644
        %v1646 = vmul.f32 %v1645, 1.442695
        %v1647 = vpow.pop %v1646
        %v1648 = vsel %vm862, %v1647, 0.0
        %1649 = vadd.xlane.f32.xlu0 %v1648
        %v1650 = vpop.xlane.xlu0 %1649
        %v1651 = vrcp.pop %v1650
        %v1652 = vmul.f32 %v1647, %v1651
        %1653 = vrot.lane.b32.xlu0 %v856, 64
        %v1654 = vpop.permute.xlu0 %1653
        %1655 = vrot.lane.b32.xlu0 %v859, 64
        %v1656 = vpop.permute.xlu0 %1655
        %v1660 = vsel %vm862, %v1652, 0
        %1662 = vmatprep.subr.mxu0 0.0
        %1663 = vmatpush1.msra.mxu0 %v1654
        %1664 = vmatprep.subr.mxu0 0.0
        %1665 = vmatpush1.msra.mxu0 %v1656
        %1666 = vmatprep.subr.mxu0 0.0
        %1667 = vmatpush1.msra.mxu0 0.0
        %1668 = vmatprep.subr.mxu0 0.0
        %1669 = vmatpush1.msra.mxu0 0.0
        %1670 = vmatprep.subr.mxu0 0.0
        %1671 = vmatpush1.msra.mxu0 0.0
        %1672 = vmatprep.subr.mxu0 0.0
        %1673 = vmatpush1.msra.mxu0 0.0
        %1674 = vmatprep.subr.mxu0 0.0
        %1675 = vmatpush1.msra.mxu0 0.0
        %1676 = vmatprep.subr.mxu0 0.0
        %1677 = vmatpush1.msra.mxu0 0.0
        %1678 = vmatprep.subr.mxu0 0.0
        %1679 = vmatpush1.msra.mxu0 0.0
        %1680 = vmatprep.subr.mxu0 0.0
        %1681 = vmatpush1.msra.mxu0 0.0
        %1682 = vmatprep.subr.mxu0 0.0
        %1683 = vmatpush1.msra.mxu0 0.0
        %1684 = vmatprep.subr.mxu0 0.0
        %1685 = vmatpush1.msra.mxu0 0.0
        %1686 = vmatprep.subr.mxu0 0.0
        %1687 = vmatpush1.msra.mxu0 0.0
        %1688 = vmatprep.subr.mxu0 0.0
        %1689 = vmatpush1.msra.mxu0 0.0
        %1690 = vmatprep.subr.mxu0 0.0
        %1691 = vmatpush1.msra.mxu0 0.0
        %1692 = vmatprep.subr.mxu0 0.0
        %1693 = vmatpush1.msra.mxu0 0.0
        %1694 = vmatprep.subr.mxu0 0.0
        %1695 = vmatpush1.msra.mxu0 0.0
        %1696 = vmatprep.subr.mxu0 0.0
        %1697 = vmatpush1.msra.mxu0 0.0
        %1698 = vmatprep.subr.mxu0 0.0
        %1699 = vmatpush1.msra.mxu0 0.0
        %1700 = vmatprep.subr.mxu0 0.0
        %1701 = vmatpush1.msra.mxu0 0.0
        %1702 = vmatprep.subr.mxu0 0.0
        %1703 = vmatpush1.msra.mxu0 0.0
        %1704 = vmatprep.subr.mxu0 0.0
        %1705 = vmatpush1.msra.mxu0 0.0
        %1706 = vmatprep.subr.mxu0 0.0
        %1707 = vmatpush1.msra.mxu0 0.0
        %1708 = vmatprep.subr.mxu0 0.0
        %1709 = vmatpush1.msra.mxu0 0.0
        %1710 = vmatprep.subr.mxu0 0.0
        %1711 = vmatpush1.msra.mxu0 0.0
        %1712 = vmatprep.subr.mxu0 0.0
        %1713 = vmatpush1.msra.mxu0 0.0
        %1714 = vmatprep.subr.mxu0 0.0
        %1715 = vmatpush1.msra.mxu0 0.0
        %1716 = vmatprep.subr.mxu0 0.0
        %1717 = vmatpush1.msra.mxu0 0.0
        %1718 = vmatprep.subr.mxu0 0.0
        %1719 = vmatpush1.msra.mxu0 0.0
        %1720 = vmatprep.subr.mxu0 0.0
        %1721 = vmatpush1.msra.mxu0 0.0
        %1722 = vmatprep.subr.mxu0 0.0
        %1723 = vmatpush1.msra.mxu0 0.0
        %1724 = vmatprep.subr.mxu0 0.0
        %1725 = vmatpush1.msra.mxu0 0.0
        %1726 = vmatprep.mubr.f32.mxu0 0.0
        %1727 = vmatmul.mubr.f32.gmra.mrb[0].mxu0 %v1660
        %v1728 = vpop.f32.mrb[0].mxu0
        %v1729 = vadd.f32 0.0, %v1728
        %v1730 = vpop.f32.mrb[0].mxu0
        %1731 = vdwg.mxu0
        %1732 = vrot.lane.b32.xlu0 %v631, 48
        %v1733 = vpop.permute.xlu0 %1732
        %1734 = vrot.lane.b32.xlu0 %v743, 48
        %v1735 = vpop.permute.xlu0 %1734
        %1736 = vrot.lane.b32.xlu0 %v746, 48
        %v1737 = vpop.permute.xlu0 %1736
        %v1738 = vsel %vm862, %v1733, 0
        %v1740 = vsel %vm862, %v1735, 0
        %v1742 = vsel %vm862, %v1737, 0
        %1744 = vmatprep.subr.mxu0 0.0
        %1745 = vmatpush1.xpose.msra.mxu0 %v1740
        %1746 = vmatprep.subr.mxu0 0.0
        %1747 = vmatpush1.xpose.msra.mxu0 %v1742
        %1748 = vmatprep.subr.mxu0 0.0
        %1749 = vmatpush1.xpose.msra.mxu0 0.0
        %1750 = vmatprep.subr.mxu0 0.0
        %1751 = vmatpush1.xpose.msra.mxu0 0.0
        %1752 = vmatprep.subr.mxu0 0.0
        %1753 = vmatpush1.xpose.msra.mxu0 0.0
        %1754 = vmatprep.subr.mxu0 0.0
        %1755 = vmatpush1.xpose.msra.mxu0 0.0
        %1756 = vmatprep.subr.mxu0 0.0
        %1757 = vmatpush1.xpose.msra.mxu0 0.0
        %1758 = vmatprep.subr.mxu0 0.0
        %1759 = vmatpush1.xpose.msra.mxu0 0.0
        %1760 = vmatprep.subr.mxu0 0.0
        %1761 = vmatpush1.xpose.msra.mxu0 0.0
        %1762 = vmatprep.subr.mxu0 0.0
        %1763 = vmatpush1.xpose.msra.mxu0 0.0
        %1764 = vmatprep.subr.mxu0 0.0
        %1765 = vmatpush1.xpose.msra.mxu0 0.0
        %1766 = vmatprep.subr.mxu0 0.0
        %1767 = vmatpush1.xpose.msra.mxu0 0.0
        %1768 = vmatprep.subr.mxu0 0.0
        %1769 = vmatpush1.xpose.msra.mxu0 0.0
        %1770 = vmatprep.subr.mxu0 0.0
        %1771 = vmatpush1.xpose.msra.mxu0 0.0
        %1772 = vmatprep.subr.mxu0 0.0
        %1773 = vmatpush1.xpose.msra.mxu0 0.0
        %1774 = vmatprep.subr.mxu0 0.0
        %1775 = vmatpush1.xpose.msra.mxu0 0.0
        %1776 = vmatprep.subr.mxu0 0.0
        %1777 = vmatpush1.xpose.msra.mxu0 0.0
        %1778 = vmatprep.subr.mxu0 0.0
        %1779 = vmatpush1.xpose.msra.mxu0 0.0
        %1780 = vmatprep.subr.mxu0 0.0
        %1781 = vmatpush1.xpose.msra.mxu0 0.0
        %1782 = vmatprep.subr.mxu0 0.0
        %1783 = vmatpush1.xpose.msra.mxu0 0.0
        %1784 = vmatprep.subr.mxu0 0.0
        %1785 = vmatpush1.xpose.msra.mxu0 0.0
        %1786 = vmatprep.subr.mxu0 0.0
        %1787 = vmatpush1.xpose.msra.mxu0 0.0
        %1788 = vmatprep.subr.mxu0 0.0
        %1789 = vmatpush1.xpose.msra.mxu0 0.0
        %1790 = vmatprep.subr.mxu0 0.0
        %1791 = vmatpush1.xpose.msra.mxu0 0.0
        %1792 = vmatprep.subr.mxu0 0.0
        %1793 = vmatpush1.xpose.msra.mxu0 0.0
        %1794 = vmatprep.subr.mxu0 0.0
        %1795 = vmatpush1.xpose.msra.mxu0 0.0
        %1796 = vmatprep.subr.mxu0 0.0
        %1797 = vmatpush1.xpose.msra.mxu0 0.0
        %1798 = vmatprep.subr.mxu0 0.0
        %1799 = vmatpush1.xpose.msra.mxu0 0.0
        %1800 = vmatprep.subr.mxu0 0.0
        %1801 = vmatpush1.xpose.msra.mxu0 0.0
        %1802 = vmatprep.subr.mxu0 0.0
        %1803 = vmatpush1.xpose.msra.mxu0 0.0
        %1804 = vmatprep.subr.mxu0 0.0
        %1805 = vmatpush1.xpose.msra.mxu0 0.0
        %1806 = vmatprep.subr.mxu0 0.0
        %1807 = vmatpush1.xpose.msra.mxu0 0.0
        %1808 = vmatprep.mubr.f32.mxu0 0.0
        %1809 = vmatmul.mubr.f32.gmra.mrb[0].mxu0 %v1738
        %v1810 = vpop.f32.mrb[0].mxu0
        %v1811 = vadd.f32 0.0, %v1810
        %v1812 = vpop.f32.mrb[0].mxu0
        %1813 = vdwg.mxu0
        %v1814 = vmul.f32 %v1811, 0.25
        %v1815 = vadd.f32 %v1814, %v947
        %v1816 = vsel %vm862, %v1815, -inf
        %1817 = vmax.xlane.f32.xlu0 %v1816
        %v1818 = vpop.xlane.xlu0 %1817
        %v1819 = vsub.f32 %v1815, %v1818
        %v1820 = vmul.f32 %v1819, 1.442695
        %v1821 = vpow.pop %v1820
        %v1822 = vsel %vm862, %v1821, 0.0
        %1823 = vadd.xlane.f32.xlu0 %v1822
        %v1824 = vpop.xlane.xlu0 %1823
        %v1825 = vrcp.pop %v1824
        %v1826 = vmul.f32 %v1821, %v1825
        %1827 = vrot.lane.b32.xlu0 %v856, 48
        %v1828 = vpop.permute.xlu0 %1827
        %1829 = vrot.lane.b32.xlu0 %v859, 48
        %v1830 = vpop.permute.xlu0 %1829
        %v1834 = vsel %vm862, %v1826, 0
        %1836 = vmatprep.subr.mxu0 0.0
        %1837 = vmatpush1.msra.mxu0 %v1828
        %1838 = vmatprep.subr.mxu0 0.0
        %1839 = vmatpush1.msra.mxu0 %v1830
        %1840 = vmatprep.subr.mxu0 0.0
        %1841 = vmatpush1.msra.mxu0 0.0
        %1842 = vmatprep.subr.mxu0 0.0
        %1843 = vmatpush1.msra.mxu0 0.0
        %1844 = vmatprep.subr.mxu0 0.0
        %1845 = vmatpush1.msra.mxu0 0.0
        %1846 = vmatprep.subr.mxu0 0.0
        %1847 = vmatpush1.msra.mxu0 0.0
        %1848 = vmatprep.subr.mxu0 0.0
        %1849 = vmatpush1.msra.mxu0 0.0
        %1850 = vmatprep.subr.mxu0 0.0
        %1851 = vmatpush1.msra.mxu0 0.0
        %1852 = vmatprep.subr.mxu0 0.0
        %1853 = vmatpush1.msra.mxu0 0.0
        %1854 = vmatprep.subr.mxu0 0.0
        %1855 = vmatpush1.msra.mxu0 0.0
        %1856 = vmatprep.subr.mxu0 0.0
        %1857 = vmatpush1.msra.mxu0 0.0
        %1858 = vmatprep.subr.mxu0 0.0
        %1859 = vmatpush1.msra.mxu0 0.0
        %1860 = vmatprep.subr.mxu0 0.0
        %1861 = vmatpush1.msra.mxu0 0.0
        %1862 = vmatprep.subr.mxu0 0.0
        %1863 = vmatpush1.msra.mxu0 0.0
        %1864 = vmatprep.subr.mxu0 0.0
        %1865 = vmatpush1.msra.mxu0 0.0
        %1866 = vmatprep.subr.mxu0 0.0
        %1867 = vmatpush1.msra.mxu0 0.0
        %1868 = vmatprep.subr.mxu0 0.0
        %1869 = vmatpush1.msra.mxu0 0.0
        %1870 = vmatprep.subr.mxu0 0.0
        %1871 = vmatpush1.msra.mxu0 0.0
        %1872 = vmatprep.subr.mxu0 0.0
        %1873 = vmatpush1.msra.mxu0 0.0
        %1874 = vmatprep.subr.mxu0 0.0
        %1875 = vmatpush1.msra.mxu0 0.0
        %1876 = vmatprep.subr.mxu0 0.0
        %1877 = vmatpush1.msra.mxu0 0.0
        %1878 = vmatprep.subr.mxu0 0.0
        %1879 = vmatpush1.msra.mxu0 0.0
        %1880 = vmatprep.subr.mxu0 0.0
        %1881 = vmatpush1.msra.mxu0 0.0
        %1882 = vmatprep.subr.mxu0 0.0
        %1883 = vmatpush1.msra.mxu0 0.0
        %1884 = vmatprep.subr.mxu0 0.0
        %1885 = vmatpush1.msra.mxu0 0.0
        %1886 = vmatprep.subr.mxu0 0.0
        %1887 = vmatpush1.msra.mxu0 0.0
        %1888 = vmatprep.subr.mxu0 0.0
        %1889 = vmatpush1.msra.mxu0 0.0
        %1890 = vmatprep.subr.mxu0 0.0
        %1891 = vmatpush1.msra.mxu0 0.0
        %1892 = vmatprep.subr.mxu0 0.0
        %1893 = vmatpush1.msra.mxu0 0.0
        %1894 = vmatprep.subr.mxu0 0.0
        %1895 = vmatpush1.msra.mxu0 0.0
        %1896 = vmatprep.subr.mxu0 0.0
        %1897 = vmatpush1.msra.mxu0 0.0
        %1898 = vmatprep.subr.mxu0 0.0
        %1899 = vmatpush1.msra.mxu0 0.0
        %1900 = vmatprep.mubr.f32.mxu0 0.0
        %1901 = vmatmul.mubr.f32.gmra.mrb[0].mxu0 %v1834
        %v1902 = vpop.f32.mrb[0].mxu0
        %v1903 = vadd.f32 0.0, %v1902
        %v1904 = vpop.f32.mrb[0].mxu0
        %1905 = vdwg.mxu0
        %1906 = vrot.lane.b32.xlu0 %v631, 32
        %v1907 = vpop.permute.xlu0 %1906
        %1908 = vrot.lane.b32.xlu0 %v743, 32
        %v1909 = vpop.permute.xlu0 %1908
        %1910 = vrot.lane.b32.xlu0 %v746, 32
        %v1911 = vpop.permute.xlu0 %1910
        %v1912 = vsel %vm862, %v1907, 0
        %v1914 = vsel %vm862, %v1909, 0
        %v1916 = vsel %vm862, %v1911, 0
        %1918 = vmatprep.subr.mxu0 0.0
        %1919 = vmatpush1.xpose.msra.mxu0 %v1914
        %1920 = vmatprep.subr.mxu0 0.0
        %1921 = vmatpush1.xpose.msra.mxu0 %v1916
        %1922 = vmatprep.subr.mxu0 0.0
        %1923 = vmatpush1.xpose.msra.mxu0 0.0
        %1924 = vmatprep.subr.mxu0 0.0
        %1925 = vmatpush1.xpose.msra.mxu0 0.0
        %1926 = vmatprep.subr.mxu0 0.0
        %1927 = vmatpush1.xpose.msra.mxu0 0.0
        %1928 = vmatprep.subr.mxu0 0.0
        %1929 = vmatpush1.xpose.msra.mxu0 0.0
        %1930 = vmatprep.subr.mxu0 0.0
        %1931 = vmatpush1.xpose.msra.mxu0 0.0
        %1932 = vmatprep.subr.mxu0 0.0
        %1933 = vmatpush1.xpose.msra.mxu0 0.0
        %1934 = vmatprep.subr.mxu0 0.0
        %1935 = vmatpush1.xpose.msra.mxu0 0.0
        %1936 = vmatprep.subr.mxu0 0.0
        %1937 = vmatpush1.xpose.msra.mxu0 0.0
        %1938 = vmatprep.subr.mxu0 0.0
        %1939 = vmatpush1.xpose.msra.mxu0 0.0
        %1940 = vmatprep.subr.mxu0 0.0
        %1941 = vmatpush1.xpose.msra.mxu0 0.0
        %1942 = vmatprep.subr.mxu0 0.0
        %1943 = vmatpush1.xpose.msra.mxu0 0.0
        %1944 = vmatprep.subr.mxu0 0.0
        %1945 = vmatpush1.xpose.msra.mxu0 0.0
        %1946 = vmatprep.subr.mxu0 0.0
        %1947 = vmatpush1.xpose.msra.mxu0 0.0
        %1948 = vmatprep.subr.mxu0 0.0
        %1949 = vmatpush1.xpose.msra.mxu0 0.0
        %1950 = vmatprep.subr.mxu0 0.0
        %1951 = vmatpush1.xpose.msra.mxu0 0.0
        %1952 = vmatprep.subr.mxu0 0.0
        %1953 = vmatpush1.xpose.msra.mxu0 0.0
        %1954 = vmatprep.subr.mxu0 0.0
        %1955 = vmatpush1.xpose.msra.mxu0 0.0
        %1956 = vmatprep.subr.mxu0 0.0
        %1957 = vmatpush1.xpose.msra.mxu0 0.0
        %1958 = vmatprep.subr.mxu0 0.0
        %1959 = vmatpush1.xpose.msra.mxu0 0.0
        %1960 = vmatprep.subr.mxu0 0.0
        %1961 = vmatpush1.xpose.msra.mxu0 0.0
        %1962 = vmatprep.subr.mxu0 0.0
        %1963 = vmatpush1.xpose.msra.mxu0 0.0
        %1964 = vmatprep.subr.mxu0 0.0
        %1965 = vmatpush1.xpose.msra.mxu0 0.0
        %1966 = vmatprep.subr.mxu0 0.0
        %1967 = vmatpush1.xpose.msra.mxu0 0.0
        %1968 = vmatprep.subr.mxu0 0.0
        %1969 = vmatpush1.xpose.msra.mxu0 0.0
        %1970 = vmatprep.subr.mxu0 0.0
        %1971 = vmatpush1.xpose.msra.mxu0 0.0
        %1972 = vmatprep.subr.mxu0 0.0
        %1973 = vmatpush1.xpose.msra.mxu0 0.0
        %1974 = vmatprep.subr.mxu0 0.0
        %1975 = vmatpush1.xpose.msra.mxu0 0.0
        %1976 = vmatprep.subr.mxu0 0.0
        %1977 = vmatpush1.xpose.msra.mxu0 0.0
        %1978 = vmatprep.subr.mxu0 0.0
        %1979 = vmatpush1.xpose.msra.mxu0 0.0
        %1980 = vmatprep.subr.mxu0 0.0
        %1981 = vmatpush1.xpose.msra.mxu0 0.0
        %1982 = vmatprep.mubr.f32.mxu0 0.0
        %1983 = vmatmul.mubr.f32.gmra.mrb[0].mxu0 %v1912
        %v1984 = vpop.f32.mrb[0].mxu0
        %v1985 = vadd.f32 0.0, %v1984
        %v1986 = vpop.f32.mrb[0].mxu0
        %1987 = vdwg.mxu0
        %v1988 = vmul.f32 %v1985, 0.25
        %v1989 = vadd.f32 %v1988, %v947
        %v1990 = vsel %vm862, %v1989, -inf
        %1991 = vmax.xlane.f32.xlu0 %v1990
        %v1992 = vpop.xlane.xlu0 %1991
        %v1993 = vsub.f32 %v1989, %v1992
        %v1994 = vmul.f32 %v1993, 1.442695
        %v1995 = vpow.pop %v1994
        %v1996 = vsel %vm862, %v1995, 0.0
        %1997 = vadd.xlane.f32.xlu0 %v1996
        %v1998 = vpop.xlane.xlu0 %1997
        %v1999 = vrcp.pop %v1998
        %v2000 = vmul.f32 %v1995, %v1999
        %2001 = vrot.lane.b32.xlu0 %v856, 32
        %v2002 = vpop.permute.xlu0 %2001
        %2003 = vrot.lane.b32.xlu0 %v859, 32
        %v2004 = vpop.permute.xlu0 %2003
        %v2008 = vsel %vm862, %v2000, 0
        %2010 = vmatprep.subr.mxu0 0.0
        %2011 = vmatpush1.msra.mxu0 %v2002
        %2012 = vmatprep.subr.mxu0 0.0
        %2013 = vmatpush1.msra.mxu0 %v2004
        %2014 = vmatprep.subr.mxu0 0.0
        %2015 = vmatpush1.msra.mxu0 0.0
        %2016 = vmatprep.subr.mxu0 0.0
        %2017 = vmatpush1.msra.mxu0 0.0
        %2018 = vmatprep.subr.mxu0 0.0
        %2019 = vmatpush1.msra.mxu0 0.0
        %2020 = vmatprep.subr.mxu0 0.0
        %2021 = vmatpush1.msra.mxu0 0.0
        %2022 = vmatprep.subr.mxu0 0.0
        %2023 = vmatpush1.msra.mxu0 0.0
        %2024 = vmatprep.subr.mxu0 0.0
        %2025 = vmatpush1.msra.mxu0 0.0
        %2026 = vmatprep.subr.mxu0 0.0
        %2027 = vmatpush1.msra.mxu0 0.0
        %2028 = vmatprep.subr.mxu0 0.0
        %2029 = vmatpush1.msra.mxu0 0.0
        %2030 = vmatprep.subr.mxu0 0.0
        %2031 = vmatpush1.msra.mxu0 0.0
        %2032 = vmatprep.subr.mxu0 0.0
        %2033 = vmatpush1.msra.mxu0 0.0
        %2034 = vmatprep.subr.mxu0 0.0
        %2035 = vmatpush1.msra.mxu0 0.0
        %2036 = vmatprep.subr.mxu0 0.0
        %2037 = vmatpush1.msra.mxu0 0.0
        %2038 = vmatprep.subr.mxu0 0.0
        %2039 = vmatpush1.msra.mxu0 0.0
        %2040 = vmatprep.subr.mxu0 0.0
        %2041 = vmatpush1.msra.mxu0 0.0
        %2042 = vmatprep.subr.mxu0 0.0
        %2043 = vmatpush1.msra.mxu0 0.0
        %2044 = vmatprep.subr.mxu0 0.0
        %2045 = vmatpush1.msra.mxu0 0.0
        %2046 = vmatprep.subr.mxu0 0.0
        %2047 = vmatpush1.msra.mxu0 0.0
        %2048 = vmatprep.subr.mxu0 0.0
        %2049 = vmatpush1.msra.mxu0 0.0
        %2050 = vmatprep.subr.mxu0 0.0
        %2051 = vmatpush1.msra.mxu0 0.0
        %2052 = vmatprep.subr.mxu0 0.0
        %2053 = vmatpush1.msra.mxu0 0.0
        %2054 = vmatprep.subr.mxu0 0.0
        %2055 = vmatpush1.msra.mxu0 0.0
        %2056 = vmatprep.subr.mxu0 0.0
        %2057 = vmatpush1.msra.mxu0 0.0
        %2058 = vmatprep.subr.mxu0 0.0
        %2059 = vmatpush1.msra.mxu0 0.0
        %2060 = vmatprep.subr.mxu0 0.0
        %2061 = vmatpush1.msra.mxu0 0.0
        %2062 = vmatprep.subr.mxu0 0.0
        %2063 = vmatpush1.msra.mxu0 0.0
        %2064 = vmatprep.subr.mxu0 0.0
        %2065 = vmatpush1.msra.mxu0 0.0
        %2066 = vmatprep.subr.mxu0 0.0
        %2067 = vmatpush1.msra.mxu0 0.0
        %2068 = vmatprep.subr.mxu0 0.0
        %2069 = vmatpush1.msra.mxu0 0.0
        %2070 = vmatprep.subr.mxu0 0.0
        %2071 = vmatpush1.msra.mxu0 0.0
        %2072 = vmatprep.subr.mxu0 0.0
        %2073 = vmatpush1.msra.mxu0 0.0
        %2074 = vmatprep.mubr.f32.mxu0 0.0
        %2075 = vmatmul.mubr.f32.gmra.mrb[0].mxu0 %v2008
        %v2076 = vpop.f32.mrb[0].mxu0
        %v2077 = vadd.f32 0.0, %v2076
        %v2078 = vpop.f32.mrb[0].mxu0
        %2079 = vdwg.mxu0
        %2080 = vrot.lane.b32.xlu0 %v631, 16
        %v2081 = vpop.permute.xlu0 %2080
        %2082 = vrot.lane.b32.xlu0 %v743, 16
        %v2083 = vpop.permute.xlu0 %2082
        %2084 = vrot.lane.b32.xlu0 %v746, 16
        %v2085 = vpop.permute.xlu0 %2084
        %v2086 = vsel %vm862, %v2081, 0
        %v2088 = vsel %vm862, %v2083, 0
        %v2090 = vsel %vm862, %v2085, 0
        %2092 = vmatprep.subr.mxu0 0.0
        %2093 = vmatpush1.xpose.msra.mxu0 %v2088
        %2094 = vmatprep.subr.mxu0 0.0
        %2095 = vmatpush1.xpose.msra.mxu0 %v2090
        %2096 = vmatprep.subr.mxu0 0.0
        %2097 = vmatpush1.xpose.msra.mxu0 0.0
        %2098 = vmatprep.subr.mxu0 0.0
        %2099 = vmatpush1.xpose.msra.mxu0 0.0
        %2100 = vmatprep.subr.mxu0 0.0
        %2101 = vmatpush1.xpose.msra.mxu0 0.0
        %2102 = vmatprep.subr.mxu0 0.0
        %2103 = vmatpush1.xpose.msra.mxu0 0.0
        %2104 = vmatprep.subr.mxu0 0.0
        %2105 = vmatpush1.xpose.msra.mxu0 0.0
        %2106 = vmatprep.subr.mxu0 0.0
        %2107 = vmatpush1.xpose.msra.mxu0 0.0
        %2108 = vmatprep.subr.mxu0 0.0
        %2109 = vmatpush1.xpose.msra.mxu0 0.0
        %2110 = vmatprep.subr.mxu0 0.0
        %2111 = vmatpush1.xpose.msra.mxu0 0.0
        %2112 = vmatprep.subr.mxu0 0.0
        %2113 = vmatpush1.xpose.msra.mxu0 0.0
        %2114 = vmatprep.subr.mxu0 0.0
        %2115 = vmatpush1.xpose.msra.mxu0 0.0
        %2116 = vmatprep.subr.mxu0 0.0
        %2117 = vmatpush1.xpose.msra.mxu0 0.0
        %2118 = vmatprep.subr.mxu0 0.0
        %2119 = vmatpush1.xpose.msra.mxu0 0.0
        %2120 = vmatprep.subr.mxu0 0.0
        %2121 = vmatpush1.xpose.msra.mxu0 0.0
        %2122 = vmatprep.subr.mxu0 0.0
        %2123 = vmatpush1.xpose.msra.mxu0 0.0
        %2124 = vmatprep.subr.mxu0 0.0
        %2125 = vmatpush1.xpose.msra.mxu0 0.0
        %2126 = vmatprep.subr.mxu0 0.0
        %2127 = vmatpush1.xpose.msra.mxu0 0.0
        %2128 = vmatprep.subr.mxu0 0.0
        %2129 = vmatpush1.xpose.msra.mxu0 0.0
        %2130 = vmatprep.subr.mxu0 0.0
        %2131 = vmatpush1.xpose.msra.mxu0 0.0
        %2132 = vmatprep.subr.mxu0 0.0
        %2133 = vmatpush1.xpose.msra.mxu0 0.0
        %2134 = vmatprep.subr.mxu0 0.0
        %2135 = vmatpush1.xpose.msra.mxu0 0.0
        %2136 = vmatprep.subr.mxu0 0.0
        %2137 = vmatpush1.xpose.msra.mxu0 0.0
        %2138 = vmatprep.subr.mxu0 0.0
        %2139 = vmatpush1.xpose.msra.mxu0 0.0
        %2140 = vmatprep.subr.mxu0 0.0
        %2141 = vmatpush1.xpose.msra.mxu0 0.0
        %2142 = vmatprep.subr.mxu0 0.0
        %2143 = vmatpush1.xpose.msra.mxu0 0.0
        %2144 = vmatprep.subr.mxu0 0.0
        %2145 = vmatpush1.xpose.msra.mxu0 0.0
        %2146 = vmatprep.subr.mxu0 0.0
        %2147 = vmatpush1.xpose.msra.mxu0 0.0
        %2148 = vmatprep.subr.mxu0 0.0
        %2149 = vmatpush1.xpose.msra.mxu0 0.0
        %2150 = vmatprep.subr.mxu0 0.0
        %2151 = vmatpush1.xpose.msra.mxu0 0.0
        %2152 = vmatprep.subr.mxu0 0.0
        %2153 = vmatpush1.xpose.msra.mxu0 0.0
        %2154 = vmatprep.subr.mxu0 0.0
        %2155 = vmatpush1.xpose.msra.mxu0 0.0
        %2156 = vmatprep.mubr.f32.mxu0 0.0
        %2157 = vmatmul.mubr.f32.gmra.mrb[0].mxu0 %v2086
        %v2158 = vpop.f32.mrb[0].mxu0
        %v2159 = vadd.f32 0.0, %v2158
        %v2160 = vpop.f32.mrb[0].mxu0
        %2161 = vdwg.mxu0
        %v2162 = vmul.f32 %v2159, 0.25
        %v2163 = vadd.f32 %v2162, %v947
        %v2164 = vsel %vm862, %v2163, -inf
        %2165 = vmax.xlane.f32.xlu0 %v2164
        %v2166 = vpop.xlane.xlu0 %2165
        %v2167 = vsub.f32 %v2163, %v2166
        %v2168 = vmul.f32 %v2167, 1.442695
        %v2169 = vpow.pop %v2168
        %v2170 = vsel %vm862, %v2169, 0.0
        %2171 = vadd.xlane.f32.xlu0 %v2170
        %v2172 = vpop.xlane.xlu0 %2171
        %v2173 = vrcp.pop %v2172
        %v2174 = vmul.f32 %v2169, %v2173
        %2175 = vrot.lane.b32.xlu0 %v856, 16
        %v2176 = vpop.permute.xlu0 %2175
        %2177 = vrot.lane.b32.xlu0 %v859, 16
        %v2178 = vpop.permute.xlu0 %2177
        %v2182 = vsel %vm862, %v2174, 0
        %2184 = vmatprep.subr.mxu0 0.0
        %2185 = vmatpush1.msra.mxu0 %v2176
        %2186 = vmatprep.subr.mxu0 0.0
        %2187 = vmatpush1.msra.mxu0 %v2178
        %2188 = vmatprep.subr.mxu0 0.0
        %2189 = vmatpush1.msra.mxu0 0.0
        %2190 = vmatprep.subr.mxu0 0.0
        %2191 = vmatpush1.msra.mxu0 0.0
        %2192 = vmatprep.subr.mxu0 0.0
        %2193 = vmatpush1.msra.mxu0 0.0
        %2194 = vmatprep.subr.mxu0 0.0
        %2195 = vmatpush1.msra.mxu0 0.0
        %2196 = vmatprep.subr.mxu0 0.0
        %2197 = vmatpush1.msra.mxu0 0.0
        %2198 = vmatprep.subr.mxu0 0.0
        %2199 = vmatpush1.msra.mxu0 0.0
        %2200 = vmatprep.subr.mxu0 0.0
        %2201 = vmatpush1.msra.mxu0 0.0
        %2202 = vmatprep.subr.mxu0 0.0
        %2203 = vmatpush1.msra.mxu0 0.0
        %2204 = vmatprep.subr.mxu0 0.0
        %2205 = vmatpush1.msra.mxu0 0.0
        %2206 = vmatprep.subr.mxu0 0.0
        %2207 = vmatpush1.msra.mxu0 0.0
        %2208 = vmatprep.subr.mxu0 0.0
        %2209 = vmatpush1.msra.mxu0 0.0
        %2210 = vmatprep.subr.mxu0 0.0
        %2211 = vmatpush1.msra.mxu0 0.0
        %2212 = vmatprep.subr.mxu0 0.0
        %2213 = vmatpush1.msra.mxu0 0.0
        %2214 = vmatprep.subr.mxu0 0.0
        %2215 = vmatpush1.msra.mxu0 0.0
        %2216 = vmatprep.subr.mxu0 0.0
        %2217 = vmatpush1.msra.mxu0 0.0
        %2218 = vmatprep.subr.mxu0 0.0
        %2219 = vmatpush1.msra.mxu0 0.0
        %2220 = vmatprep.subr.mxu0 0.0
        %2221 = vmatpush1.msra.mxu0 0.0
        %2222 = vmatprep.subr.mxu0 0.0
        %2223 = vmatpush1.msra.mxu0 0.0
        %2224 = vmatprep.subr.mxu0 0.0
        %2225 = vmatpush1.msra.mxu0 0.0
        %2226 = vmatprep.subr.mxu0 0.0
        %2227 = vmatpush1.msra.mxu0 0.0
        %2228 = vmatprep.subr.mxu0 0.0
        %2229 = vmatpush1.msra.mxu0 0.0
        %2230 = vmatprep.subr.mxu0 0.0
        %2231 = vmatpush1.msra.mxu0 0.0
        %2232 = vmatprep.subr.mxu0 0.0
        %2233 = vmatpush1.msra.mxu0 0.0
        %2234 = vmatprep.subr.mxu0 0.0
        %2235 = vmatpush1.msra.mxu0 0.0
        %2236 = vmatprep.subr.mxu0 0.0
        %2237 = vmatpush1.msra.mxu0 0.0
        %2238 = vmatprep.subr.mxu0 0.0
        %2239 = vmatpush1.msra.mxu0 0.0
        %2240 = vmatprep.subr.mxu0 0.0
        %2241 = vmatpush1.msra.mxu0 0.0
        %2242 = vmatprep.subr.mxu0 0.0
        %2243 = vmatpush1.msra.mxu0 0.0
        %2244 = vmatprep.subr.mxu0 0.0
        %2245 = vmatpush1.msra.mxu0 0.0
        %2246 = vmatprep.subr.mxu0 0.0
        %2247 = vmatpush1.msra.mxu0 0.0
        %2248 = vmatprep.mubr.f32.mxu0 0.0
        %2249 = vmatmul.mubr.f32.gmra.mrb[0].mxu0 %v2182
        %v2250 = vpop.f32.mrb[0].mxu0
        %v2251 = vadd.f32 0.0, %v2250
        %v2252 = vpop.f32.mrb[0].mxu0
        %2253 = vdwg.mxu0
        %2255 = vrot.lane.b32.xlu0 %v1207, 16
        %v2256 = vpop.permute.xlu0 %2255
        %2259 = vrot.lane.b32.xlu0 %v1381, 32
        %v2260 = vpop.permute.xlu0 %2259
        %2263 = vrot.lane.b32.xlu0 %v1555, 48
        %v2264 = vpop.permute.xlu0 %2263
        %2267 = vrot.lane.b32.xlu0 %v1729, 64
        %v2268 = vpop.permute.xlu0 %2267
        %2271 = vrot.lane.b32.xlu0 %v1903, 80
        %v2272 = vpop.permute.xlu0 %2271
        %2275 = vrot.lane.b32.xlu0 %v2077, 96
        %v2276 = vpop.permute.xlu0 %2275
        %2279 = vrot.lane.b32.xlu0 %v2251, 112
        %v2280 = vpop.permute.xlu0 %2279
        %v2282 = vsel %vm862, %v1031, %v2256
        %vm2283 = vcmask 261120
        %v2284 = vsel %vm2283, %v2282, %v2260
        %vm2285 = vcmask 392192
        %v2286 = vsel %vm2285, %v2284, %v2264
        %vm2287 = vcmask 523264
        %v2288 = vsel %vm2287, %v2286, %v2268
        %vm2289 = vcmask 654336
        %v2290 = vsel %vm2289, %v2288, %v2272
        %vm2291 = vcmask 785408
        %v2292 = vsel %vm2291, %v2290, %v2276
        %vm2293 = vcmask 916480
        %v2294 = vsel %vm2293, %v2292, %v2280
        %v2295 = vpack.c.bf16 %v2294, %v2294
        %v2296 = vld [vmem:[%s10] sm:$0xf]
        %v2297 = vld [vmem:[%s10 + $0x4] sm:$0xf]
        %v2298 = vld [vmem:[%s10 + $0x8] sm:$0xf]
        %v2299 = vld [vmem:[%s10 + $0xc] sm:$0xf]
        %v2300 = vld [vmem:[%s10 + $0x10] sm:$0xf]
        %v2301 = vld [vmem:[%s10 + $0x14] sm:$0xf]
        %v2302 = vld [vmem:[%s10 + $0x18] sm:$0xf]
        %v2303 = vld [vmem:[%s10 + $0x1c] sm:$0xf]
        %v2304 = vld [vmem:[%s10 + $0x20] sm:$0xf]
        %v2305 = vld [vmem:[%s10 + $0x24] sm:$0xf]
        %v2306 = vld [vmem:[%s10 + $0x28] sm:$0xf]
        %v2307 = vld [vmem:[%s10 + $0x2c] sm:$0xf]
        %v2308 = vld [vmem:[%s10 + $0x30] sm:$0xf]
        %v2309 = vld [vmem:[%s10 + $0x34] sm:$0xf]
        %v2310 = vld [vmem:[%s10 + $0x38] sm:$0xf]
        %v2311 = vld [vmem:[%s10 + $0x3c] sm:$0xf]
        %v2312 = vld [vmem:[%s11] sm:$0x1]
        %v2314 = vlaneseq
        %v2315 = vshrl.u32 %v2314, 7
        %v2316 = vsub.s32 0, %v2315
        %v2317 = vrot.slane %v2312, %v2316
        %v2335 = vunpack.c.l.b16 %v2296
        %v2336 = vunpack.c.l.b16 %v2297
        %v2337 = vunpack.c.l.b16 %v2298
        %v2338 = vunpack.c.l.b16 %v2299
        %v2339 = vunpack.c.l.b16 %v2300
        %v2340 = vunpack.c.l.b16 %v2301
        %v2341 = vunpack.c.l.b16 %v2302
        %v2342 = vunpack.c.l.b16 %v2303
        %v2343 = vunpack.c.l.b16 %v2304
        %v2344 = vunpack.c.l.b16 %v2305
        %v2345 = vunpack.c.l.b16 %v2306
        %v2346 = vunpack.c.l.b16 %v2307
        %v2347 = vunpack.c.l.b16 %v2308
        %v2348 = vunpack.c.l.b16 %v2309
        %v2349 = vunpack.c.l.b16 %v2310
        %v2350 = vunpack.c.l.b16 %v2311
        %v2351 = vpack.c.b16 %v2336, %v2335
        %v2352 = vpack.c.b16 %v2338, %v2337
        %v2353 = vpack.c.b16 %v2340, %v2339
        %v2354 = vpack.c.b16 %v2342, %v2341
        %v2355 = vpack.c.b16 %v2344, %v2343
        %v2356 = vpack.c.b16 %v2346, %v2345
        %v2357 = vpack.c.b16 %v2348, %v2347
        %v2358 = vpack.c.b16 %v2350, %v2349
        %2367 = vmatprep.subr.bf16.mxu0 0
        %2368 = vmatpush1.bf16.msra.mxu0 %v2351
        %2369 = vmatprep.subr.bf16.mxu0 0
        %2370 = vmatpush1.bf16.msra.mxu0 %v2352
        %2371 = vmatprep.subr.bf16.mxu0 0
        %2372 = vmatpush1.bf16.msra.mxu0 %v2353
        %2373 = vmatprep.subr.bf16.mxu0 0
        %2374 = vmatpush1.bf16.msra.mxu0 %v2354
        %2375 = vmatprep.subr.bf16.mxu0 0
        %2376 = vmatpush1.bf16.msra.mxu0 %v2355
        %2377 = vmatprep.subr.bf16.mxu0 0
        %2378 = vmatpush1.bf16.msra.mxu0 %v2356
        %2379 = vmatprep.subr.bf16.mxu0 0
        %2380 = vmatpush1.bf16.msra.mxu0 %v2357
        %2381 = vmatprep.subr.bf16.mxu0 0
        %2382 = vmatpush1.bf16.msra.mxu0 %v2358
        %2383 = vmatprep.subr.bf16.mxu0 0
        %2384 = vmatpush1.bf16.msra.mxu0 0
        %2385 = vmatprep.subr.bf16.mxu0 0
        %2386 = vmatpush1.bf16.msra.mxu0 0
        %2387 = vmatprep.subr.bf16.mxu0 0
        %2388 = vmatpush1.bf16.msra.mxu0 0
        %2389 = vmatprep.subr.bf16.mxu0 0
        %2390 = vmatpush1.bf16.msra.mxu0 0
        %2391 = vmatprep.subr.bf16.mxu0 0
        %2392 = vmatpush1.bf16.msra.mxu0 0
        %2393 = vmatprep.subr.bf16.mxu0 0
        %2394 = vmatpush1.bf16.msra.mxu0 0
        %2395 = vmatprep.subr.bf16.mxu0 0
        %2396 = vmatpush1.bf16.msra.mxu0 0
        %2397 = vmatprep.subr.bf16.mxu0 0
        %2398 = vmatpush1.bf16.msra.mxu0 0
        %2399 = vmatprep.mubr.bf16.mxu0 0
        %2400 = vmatmul.mubr.bf16.gmra.mrb[0].mxu0 %v2295
        %v2401 = vpop.f32.mrb[0].mxu0
        %v2402 = vadd.f32 %v2317, %v2401
        %v2403 = vpop.f32.mrb[0].mxu0
        %v2404 = vpop.f32.mrb[0].mxu0
        %v2405 = vpop.f32.mrb[0].mxu0
        %2406 = vdwg.mxu0
        %v2407 = vadd.f32 %v518, %v2402
        %v2408 = vld [vmem:[%s12] sm:$0x1]
        %v2409 = vld [vmem:[%s13] sm:$0x1]
        %2410 = vadd.xlane.f32.xlu0 %v2407
        %v2411 = vpop.xlane.xlu0 %2410
        %v2412 = vrcp.pop 128.0
        %v2413 = vmul.f32 %v2411, %v2412
        %v2414 = vsub.f32 %v2407, %v2413
        %v2415 = vmul.f32 %v2414, %v2414
        %2416 = vadd.xlane.f32.xlu0 %v2415
        %v2417 = vpop.xlane.xlu0 %2416
        %v2418 = vmul.f32 %v2417, %v2412
        %v2419 = vadd.f32 %v2418, 1e-05
        %v2420 = vrsqrt.pop %v2419
        %v2421 = vmul.f32 %v2414, %v2420
        %v2423 = vlaneseq
        %v2424 = vshrl.u32 %v2423, 7
        %v2425 = vsub.s32 0, %v2424
        %v2426 = vrot.slane %v2408, %v2425
        %v2428 = vmul.f32 %v2421, %v2426
        %v2430 = vlaneseq
        %v2431 = vshrl.u32 %v2430, 7
        %v2432 = vsub.s32 0, %v2431
        %v2433 = vrot.slane %v2409, %v2432
        %v2435 = vadd.f32 %v2428, %v2433
        %2436 = vst [vmem:[%s499] sm:$0xff] %v2435
        %s2437 = sand.u32 %s350, 1
        %s2438 = scalar_lea.sflag [#allocation3], %s2437
        %s2439 = sand.u32 %s350, 1
        %s2440 = smul.addr %s2439, 8
        %s2441 = scalar_lea.vmem [#allocation2], %s2440
        // Predicated region
        $region77: #{cross_modal_attention.1} parent=75 // pred_check
          %p2442 = pneg %p360
        $region78: #{cross_modal_attention.1} parent=75 // pred_check_branch
          %2444 = sbr.rel (%p2442) target = $region80
        $region79: #{cross_modal_attention.1} parent=75 // pred_region
          %s2446 = ssub.s32 128, 128
          %2447 = vsyncadd %s2438, %s2446
          %s2448 = smul.addr %s28, 128
          %s2449 = scalar_lea.hbm %s14, %s2448
          %s2451 = sshll.u32 %s2441, 4
          %s2452 = int_to_ptr.vmem [resolvable:$true] %s2451
          %2454 = dma.vmem_to_hbm [thread:$0]  %s2452, 128, %s2449, %s2438
        $region80: #{cross_modal_attention.1} parent=75 // pred_fallthru
          _
      $region76: #{cross_modal_attention.1} parent=5 // pred_fallthru
        _
      %p2455 = scmp.le.s32.totalorder 2, %s23
      // Predicated region
      $region81: #{cross_modal_attention.1} parent=5 // pred_check
        %p2456 = pneg %p2455
      $region82: #{cross_modal_attention.1} parent=5 // pred_check_branch
        %2458 = sbr.rel (%p2456) target = $region84
      $region83: #{cross_modal_attention.1} parent=5 // pred_region
        %s2459 = ssub.s32 %s23, 2
        // Predicated region
        $region85: #{cross_modal_attention.1} parent=83 // pred_check
          %p2460 = pneg %p366
        $region86: #{cross_modal_attention.1} parent=83 // pred_check_branch
          %2462 = sbr.rel (%p2460) target = $region88
        $region87: #{cross_modal_attention.1} parent=83 // pred_region
          %s2463 = sand.u32 %s351, 1
          %s2464 = scalar_lea.sflag [#allocation3], %s2463
          %s2465 = sand.u32 %s351, 1
          %s2466 = smul.addr %s2465, 8
          %s2467 = scalar_lea.vmem [#allocation2], %s2466
          %2468 = dma.done %s2464, 128
        $region88: #{cross_modal_attention.1} parent=83 // pred_fallthru
          _
      $region84: #{cross_modal_attention.1} parent=5 // pred_fallthru
        _
    $region6: #{cross_modal_attention.1} parent=1 // loop_footer
      %s27 = sadd.s32 1, %s23
    $region7: #{cross_modal_attention.1} parent=1 // loop_footer_branch
      %22 = sbr.rel target = $region3
    $region8: #{cross_modal_attention.1} parent=1 // loop_exit
      _
    %2469 = vsyncpa [#allocation3], 1
    %s2470 = scalar_lea.sflag [#allocation3], 1
    %2471 = vsyncpa %s2470, 1

</llo_original>
